<compile_context>
chip_gen: v7x
topology: tpu7x:2x2x1
jax: 0.10.0
libtpu: 0.0.40
codegen_flags: <defaults>
</compile_context>

<pallas_src>
import jax
import jax.numpy as jnp
from jax.experimental import pallas as pl
from jax.experimental.pallas import tpu as pltpu

NEG = -1e9          # mask value; safe here since |scores| << 1e8 (see review note)
LEAKY = 0.2


def _elu(x):
    # exp argument clamped so large positive x never produces a transient inf.
    return jnp.where(x > 0.0, x, jnp.exp(jnp.minimum(x, 0.0)) - 1.0)


# ----------------------------------------------------------------------------
# Fused HGAT kernel: one grid step per batch element. Everything stays in VMEM.
# ----------------------------------------------------------------------------
def _hgat_fused_kernel(x_ref, w_ref, ht_ref, adj_ref, asrc_ref, adst_ref,
                       aw_ref, ab_ref, au_ref, out_ref):
    # ---- fused projection: wx = x @ W (K = F is tiny; keep f32) -------------
    wx = jnp.dot(x_ref[...], w_ref[...],
                 preferred_element_type=jnp.float32)                  # (N, Dh)
    wx_bf = wx.astype(jnp.bfloat16)

    ht = ht_ref[...]                       # (E, N) incidence^T, {0,1}
    adj = adj_ref[...]                     # (N, N)
    a_src = asrc_ref[...]                  # (1, Dh)
    a_dst = adst_ref[...]                  # (1, Dh)
    aw = aw_ref[...].astype(jnp.bfloat16)  # (Dh, 2Dh)  MXU operand in bf16
    ab = ab_ref[...]                       # (1, 2Dh)
    au = au_ref[...]                       # (1, 2Dh)

    E, N = ht.shape
    Dh = wx.shape[-1]

    # ---- GAT pairwise scores: leaky_relu(a_src.wx_i + a_dst.wx_j) -----------
    s_src = jnp.sum(wx * a_src, axis=-1, keepdims=True)               # (N,1) VPU
    s_dst_row = jnp.einsum('od,nd->on', a_dst, wx,
                           preferred_element_type=jnp.float32)        # (1,N)
    scores = s_src + s_dst_row                                        # (N,N)
    scores = jnp.where(scores > 0.0, scores, LEAKY * scores)

    # ---- industry_tensor: attention over the industry adjacency graph -------
    ind_logits = jnp.where(adj > 0.0, scores, NEG)
    m = jnp.max(ind_logits, axis=-1, keepdims=True)
    p = jnp.exp(ind_logits - m)
    alpha_ind = p * pl.reciprocal(jnp.sum(p, axis=-1, keepdims=True),
                                  approx=True)
    indus = jnp.dot(alpha_ind.astype(jnp.bfloat16), wx_bf,
                    preferred_element_type=jnp.float32)               # (N,Dh)

    # ---- hyperedge_tensor: masked mean of member-node features per edge -----
    deg_inv = pl.reciprocal(
        jnp.maximum(jnp.sum(ht, axis=-1, keepdims=True), 1.0), approx=True)
    hedge = jnp.dot(ht.astype(jnp.bfloat16), wx_bf,
                    preferred_element_type=jnp.float32) * deg_inv     # (E,Dh)
    he = _elu(hedge)

    # ---- all_hyperedge_tensor: per edge, attention over member nodes --------
    # Batched masked softmax (E,N,N) + ONE MXU matmul; never touches HBM.
    mask3 = jnp.broadcast_to(ht[:, None, :], (E, N, N)) > 0.0
    sc3 = jnp.broadcast_to(scores[None, :, :], (E, N, N))
    logits3 = jnp.where(mask3, sc3, NEG)
    m3 = jnp.max(logits3, axis=-1, keepdims=True)
    p3 = jnp.exp(logits3 - m3)
    alpha3 = p3 * pl.reciprocal(jnp.sum(p3, axis=-1, keepdims=True),
                                approx=True)                          # (E,N,N)
    allh = jnp.dot(alpha3.reshape(E * N, N).astype(jnp.bfloat16), wx_bf,
                   preferred_element_type=jnp.float32).reshape(E, N, Dh)
    A = _elu(allh)                                                    # (E,N,Dh)

    # ---- stage 1: edge_attn over member hyperedges (masked softmax over E) --
    t = jnp.tanh(jnp.dot(he.astype(jnp.bfloat16), aw,
                         preferred_element_type=jnp.float32) + ab)    # (E,2Dh)
    s_e = jnp.sum(t * au, axis=-1, keepdims=True)                     # (E,1) VPU
    # nodes with zero member hyperedges would degenerate to a uniform softmax;
    # the incidence H is assumed (and constructed in the demo) to cover all nodes.
    logit_en = jnp.where(ht > 0.0, s_e, NEG)                          # (E,N)
    m_en = jnp.max(logit_en, axis=0, keepdims=True)
    p_en = jnp.exp(logit_en - m_en)
    coefs = p_en * pl.reciprocal(jnp.sum(p_en, axis=0, keepdims=True),
                                 approx=True)                         # (E,N)
    agg = jnp.sum(coefs[:, :, None] * A, axis=0)                      # (N,Dh)

    # ---- stage 2: edge_attn over {industry_i, aggregated_i} (softmax over 2)
    s_ind = jnp.sum(jnp.tanh(jnp.dot(indus.astype(jnp.bfloat16), aw,
                                     preferred_element_type=jnp.float32) + ab)
                    * au, axis=-1, keepdims=True)                     # (N,1)
    s_agg = jnp.sum(jnp.tanh(jnp.dot(agg.astype(jnp.bfloat16), aw,
                                     preferred_element_type=jnp.float32) + ab)
                    * au, axis=-1, keepdims=True)                     # (N,1)
    mx = jnp.maximum(s_ind, s_agg)
    e1 = jnp.exp(s_ind - mx)
    e2 = jnp.exp(s_agg - mx)
    inv = pl.reciprocal(e1 + e2, approx=True)
    out_ref[...] = (e1 * indus + e2 * agg) * inv


# ----------------------------------------------------------------------------
# Full HGAT forward (inference).
# ----------------------------------------------------------------------------
def hgat_forward(x, H, adj, params):
    B, N, F = x.shape
    E = H.shape[1]
    Dh = params["W"].shape[1]
    HT = jnp.transpose(H).astype(jnp.float32)           # (E, N)
    adj_f = adj.astype(jnp.float32)

    return pl.pallas_call(
        _hgat_fused_kernel,
        out_shape=jax.ShapeDtypeStruct((B, N, Dh), jnp.float32),
        grid=(B,),
        in_specs=[
            pl.BlockSpec((None, N, F), lambda b: (b, 0, 0)),   # x  (per-batch)
            pl.BlockSpec((F, Dh), lambda b: (0, 0)),           # W
            pl.BlockSpec((E, N), lambda b: (0, 0)),            # H^T
            pl.BlockSpec((N, N), lambda b: (0, 0)),            # adj
            pl.BlockSpec((1, Dh), lambda b: (0, 0)),           # a_src
            pl.BlockSpec((1, Dh), lambda b: (0, 0)),           # a_dst
            pl.BlockSpec((Dh, 2 * Dh), lambda b: (0, 0)),      # attn_w
            pl.BlockSpec((1, 2 * Dh), lambda b: (0, 0)),       # attn_b
            pl.BlockSpec((1, 2 * Dh), lambda b: (0, 0)),       # attn_u
        ],
        out_specs=pl.BlockSpec((None, N, Dh), lambda b: (b, 0, 0)),
        compiler_params=pltpu.CompilerParams(
            dimension_semantics=("parallel",),
            vmem_limit_bytes=48 * 1024 * 1024),
    )(x, params["W"], HT, adj_f, params["a_src"], params["a_dst"],
      params["attn_w"], params["attn_b"], params["attn_u"])


# Pure-JAX f32 reference (same math, no Pallas) for a numerical sanity check.
def hgat_reference(x, H, adj, params):
    Wx = x @ params["W"]                                               # (B,N,Dh)
    a_src, a_dst = params["a_src"][0], params["a_dst"][0]
    s_src = Wx @ a_src
    s_dst = Wx @ a_dst
    scores = s_src[:, :, None] + s_dst[:, None, :]
    scores = jnp.where(scores > 0.0, scores, LEAKY * scores)
    alpha_ind = jax.nn.softmax(jnp.where(adj[None] > 0.0, scores, NEG), axis=-1)
    indus = alpha_ind @ Wx
    HT = H.T
    deg = jnp.maximum(HT.sum(-1, keepdims=True), 1.0)
    hedge = jnp.einsum('en,bnd->bed', HT, Wx) / deg
    logits3 = jnp.where(HT[None, :, None, :] > 0.0, scores[:, None, :, :], NEG)
    alpha3 = jax.nn.softmax(logits3, axis=-1)
    allh = jnp.einsum('benj,bjd->bend', alpha3, Wx)
    A, he = _elu(allh), _elu(hedge)
    w, bv, u = params["attn_w"], params["attn_b"], params["attn_u"]
    s_e = jnp.einsum('bek,ok->beo', jnp.tanh(he @ w + bv), u)          # (B,E,1)
    coefs = jax.nn.softmax(jnp.where(HT[None] > 0.0, s_e, NEG), axis=1)  # (B,E,N)
    agg = jnp.einsum('ben,bend->bnd', coefs, A)
    s_ind = jnp.sum(jnp.tanh(indus @ w + bv) * u, axis=-1, keepdims=True)
    s_agg = jnp.sum(jnp.tanh(agg @ w + bv) * u, axis=-1, keepdims=True)
    c = jax.nn.softmax(jnp.concatenate([s_ind, s_agg], -1), axis=-1)
    return c[..., 0:1] * indus + c[..., 1:2] * agg


if __name__ == "__main__":
    # Small demo shapes: B even (both v7x TCs busy), Dh a multiple of 128
    # (lane-dense output stores), E <= N.
    B, N, E, F, Dh = 2, 16, 6, 8, 128
    key = jax.random.PRNGKey(0)
    kx, kh, ka, k1, k2, k3, k4, k5 = jax.random.split(key, 8)

    x = jax.random.normal(kx, (B, N, F), jnp.float32)
    H = (jax.random.uniform(kh, (N, E)) < 0.35).astype(jnp.float32)
    H = H.at[jnp.arange(N), jnp.arange(N) % E].set(1.0)     # every node in >=1 edge
    H = H.at[jnp.arange(E), jnp.arange(E)].set(1.0)         # every edge non-empty
    adj = (jax.random.uniform(ka, (N, N)) < 0.3).astype(jnp.float32)
    adj = jnp.maximum(adj, adj.T)
    adj = adj.at[jnp.arange(N), jnp.arange(N)].set(1.0)

    params = {
        "W":      jax.random.normal(k1, (F, Dh), jnp.float32) / jnp.sqrt(F),
        "a_src":  jax.random.normal(k2, (1, Dh), jnp.float32) * 0.1,
        "a_dst":  jax.random.normal(k3, (1, Dh), jnp.float32) * 0.1,
        "attn_w": jax.random.normal(k4, (Dh, 2 * Dh), jnp.float32) / jnp.sqrt(Dh),
        "attn_b": jnp.zeros((1, 2 * Dh), jnp.float32),
        "attn_u": jax.random.normal(k5, (1, 2 * Dh), jnp.float32) * 0.1,
    }

    out = jax.jit(hgat_forward)(x, H, adj, params)
    out = jax.block_until_ready(out)

    assert out.shape == (B, N, Dh)
    assert bool(jnp.all(jnp.isfinite(out)))
    ref = hgat_reference(x, H, adj, params)
    # bf16 MXU operands + approx reciprocals => slightly looser tolerance vs f32 ref.
    assert bool(jnp.allclose(out, ref, atol=3e-2, rtol=3e-2)), "mismatch vs reference"

    print("KERNEL_OK")
</pallas_src>

<mosaic_0001>
module attributes {stable_mosaic.version = 11 : i64} {
  func.func @_hgat_fused_kernel(%arg0: i32, %arg1: memref<1x16x8xf32, #tpu.memory_space<vmem>>, %arg2: memref<8x128xf32, #tpu.memory_space<vmem>>, %arg3: memref<6x16xf32, #tpu.memory_space<vmem>>, %arg4: memref<16x16xf32, #tpu.memory_space<vmem>>, %arg5: memref<1x128xf32, #tpu.memory_space<vmem>>, %arg6: memref<1x128xf32, #tpu.memory_space<vmem>>, %arg7: memref<128x256xf32, #tpu.memory_space<vmem>>, %arg8: memref<1x256xf32, #tpu.memory_space<vmem>>, %arg9: memref<1x256xf32, #tpu.memory_space<vmem>>, %arg10: memref<1x16x128xf32, #tpu.memory_space<vmem>>) attributes {dimension_semantics = [#tpu.dimension_semantics<parallel>], iteration_bounds = array<i64: 2>, scalar_prefetch = 0 : i64, scratch_operands = 0 : i64, tpu.core_type = #tpu.core_type<tc>, window_params = [{transform_indices = @transform_0, window_bounds = array<i64: 1, 16, 8>}, {pipeline_mode = #tpu.pipeline_mode<synchronous>, transform_indices = @transform_1, window_bounds = array<i64: 8, 128>}, {pipeline_mode = #tpu.pipeline_mode<synchronous>, transform_indices = @transform_2, window_bounds = array<i64: 6, 16>}, {pipeline_mode = #tpu.pipeline_mode<synchronous>, transform_indices = @transform_3, window_bounds = array<i64: 16, 16>}, {pipeline_mode = #tpu.pipeline_mode<synchronous>, transform_indices = @transform_4, window_bounds = array<i64: 1, 128>}, {pipeline_mode = #tpu.pipeline_mode<synchronous>, transform_indices = @transform_5, window_bounds = array<i64: 1, 128>}, {pipeline_mode = #tpu.pipeline_mode<synchronous>, transform_indices = @transform_6, window_bounds = array<i64: 128, 256>}, {pipeline_mode = #tpu.pipeline_mode<synchronous>, transform_indices = @transform_7, window_bounds = array<i64: 1, 256>}, {pipeline_mode = #tpu.pipeline_mode<synchronous>, transform_indices = @transform_8, window_bounds = array<i64: 1, 256>}, {transform_indices = @transform_9, window_bounds = array<i64: 1, 16, 128>}]} {
    %c0 = arith.constant 0 : index
    %c0_0 = arith.constant 0 : index
    %c0_1 = arith.constant 0 : index
    %0 = vector.load %arg1[%c0, %c0_0, %c0_1] : memref<1x16x8xf32, #tpu.memory_space<vmem>>, vector<1x16x8xf32>
    %1 = vector.shape_cast %0 : vector<1x16x8xf32> to vector<16x8xf32>
    %c0_2 = arith.constant 0 : index
    %c0_3 = arith.constant 0 : index
    %2 = vector.load %arg2[%c0_2, %c0_3] : memref<8x128xf32, #tpu.memory_space<vmem>>, vector<8x128xf32>
    %cst = arith.constant dense<0.000000e+00> : vector<16x128xf32>
    %3 = tpu.matmul %1, %2, %cst {dimension_numbers = #tpu.dot_dimension_numbers<[1], [0], [0], [1], [0, 0, 1, 1], [], []>} : vector<16x8xf32>, vector<8x128xf32>, vector<16x128xf32> -> vector<16x128xf32>
    %4 = arith.truncf %3 : vector<16x128xf32> to vector<16x128xbf16>
    %c0_4 = arith.constant 0 : index
    %c0_5 = arith.constant 0 : index
    %5 = vector.load %arg3[%c0_4, %c0_5] : memref<6x16xf32, #tpu.memory_space<vmem>>, vector<6x16xf32>
    %c0_6 = arith.constant 0 : index
    %c0_7 = arith.constant 0 : index
    %6 = vector.load %arg4[%c0_6, %c0_7] : memref<16x16xf32, #tpu.memory_space<vmem>>, vector<16x16xf32>
    %c0_8 = arith.constant 0 : index
    %c0_9 = arith.constant 0 : index
    %7 = vector.load %arg5[%c0_8, %c0_9] : memref<1x128xf32, #tpu.memory_space<vmem>>, vector<1x128xf32>
    %c0_10 = arith.constant 0 : index
    %c0_11 = arith.constant 0 : index
    %8 = vector.load %arg6[%c0_10, %c0_11] : memref<1x128xf32, #tpu.memory_space<vmem>>, vector<1x128xf32>
    %c0_12 = arith.constant 0 : index
    %c0_13 = arith.constant 0 : index
    %9 = vector.load %arg7[%c0_12, %c0_13] : memref<128x256xf32, #tpu.memory_space<vmem>>, vector<128x256xf32>
    %10 = arith.truncf %9 : vector<128x256xf32> to vector<128x256xbf16>
    %c0_14 = arith.constant 0 : index
    %c0_15 = arith.constant 0 : index
    %11 = vector.load %arg8[%c0_14, %c0_15] : memref<1x256xf32, #tpu.memory_space<vmem>>, vector<1x256xf32>
    %c0_16 = arith.constant 0 : index
    %c0_17 = arith.constant 0 : index
    %12 = vector.load %arg9[%c0_16, %c0_17] : memref<1x256xf32, #tpu.memory_space<vmem>>, vector<1x256xf32>
    %13 = vector.broadcast %7 : vector<1x128xf32> to vector<16x128xf32>
    %14 = arith.mulf %3, %13 : vector<16x128xf32>
    %cst_18 = arith.constant dense<0.000000e+00> : vector<16xf32>
    %15 = vector.multi_reduction <add>, %14, %cst_18 [1] : vector<16x128xf32> to vector<16xf32>
    %16 = vector.shape_cast %15 : vector<16xf32> to vector<16x1xf32>
    "tpu.trace_start"() <{level = 10 : i32, message = "od,nd->on"}> : () -> ()
    %cst_19 = arith.constant dense<0.000000e+00> : vector<1x16xf32>
    %17 = tpu.matmul %8, %3, %cst_19 {dimension_numbers = #tpu.dot_dimension_numbers<[1], [1], [0], [0], [0, 0, 1, 0], [], []>} : vector<1x128xf32>, vector<16x128xf32>, vector<1x16xf32> -> vector<1x16xf32>
    "tpu.trace_stop"() : () -> ()
    %18 = vector.broadcast %16 : vector<16x1xf32> to vector<16x16xf32>
    %19 = vector.broadcast %17 : vector<1x16xf32> to vector<16x16xf32>
    %20 = arith.addf %18, %19 : vector<16x16xf32>
    %cst_20 = arith.constant 0.000000e+00 : f32
    %21 = vector.broadcast %cst_20 : f32 to vector<16x16xf32>
    %22 = arith.cmpf ogt, %20, %21 : vector<16x16xf32>
    %cst_21 = arith.constant 2.000000e-01 : f32
    %23 = vector.broadcast %cst_21 : f32 to vector<16x16xf32>
    %24 = arith.mulf %23, %20 : vector<16x16xf32>
    %25 = arith.select %22, %20, %24 : vector<16x16xi1>, vector<16x16xf32>
    %cst_22 = arith.constant 0.000000e+00 : f32
    %26 = vector.broadcast %cst_22 : f32 to vector<16x16xf32>
    %27 = arith.cmpf ogt, %6, %26 : vector<16x16xf32>
    %cst_23 = arith.constant -1.000000e+09 : f32
    %28 = vector.broadcast %cst_23 : f32 to vector<16x16xf32>
    %29 = arith.select %27, %25, %28 : vector<16x16xi1>, vector<16x16xf32>
    %cst_24 = arith.constant dense<0xFF800000> : vector<16xf32>
    %30 = vector.multi_reduction <maximumf>, %29, %cst_24 [1] : vector<16x16xf32> to vector<16xf32>
    %31 = vector.shape_cast %30 : vector<16xf32> to vector<16x1xf32>
    %32 = vector.broadcast %31 : vector<16x1xf32> to vector<16x16xf32>
    %33 = arith.subf %29, %32 : vector<16x16xf32>
    %34 = math.exp %33 : vector<16x16xf32>
    %cst_25 = arith.constant dense<0.000000e+00> : vector<16xf32>
    %35 = vector.multi_reduction <add>, %34, %cst_25 [1] : vector<16x16xf32> to vector<16xf32>
    %36 = vector.shape_cast %35 : vector<16xf32> to vector<16x1xf32>
    %37 = tpu.reciprocal %36 {approx = true} : vector<16x1xf32> -> vector<16x1xf32>
    %38 = vector.broadcast %37 : vector<16x1xf32> to vector<16x16xf32>
    %39 = arith.mulf %34, %38 : vector<16x16xf32>
    %40 = arith.truncf %39 : vector<16x16xf32> to vector<16x16xbf16>
    %cst_26 = arith.constant dense<0.000000e+00> : vector<16x128xf32>
    %41 = tpu.matmul %40, %4, %cst_26 {dimension_numbers = #tpu.dot_dimension_numbers<[1], [0], [0], [1], [0, 0, 1, 1], [], []>} : vector<16x16xbf16>, vector<16x128xbf16>, vector<16x128xf32> -> vector<16x128xf32>
    %cst_27 = arith.constant dense<0.000000e+00> : vector<6xf32>
    %42 = vector.multi_reduction <add>, %5, %cst_27 [1] : vector<6x16xf32> to vector<6xf32>
    %43 = vector.shape_cast %42 : vector<6xf32> to vector<6x1xf32>
    %cst_28 = arith.constant 1.000000e+00 : f32
    %44 = vector.broadcast %cst_28 : f32 to vector<6x1xf32>
    %45 = arith.maximumf %43, %44 : vector<6x1xf32>
    %46 = tpu.reciprocal %45 {approx = true} : vector<6x1xf32> -> vector<6x1xf32>
    %47 = arith.truncf %5 : vector<6x16xf32> to vector<6x16xbf16>
    %cst_29 = arith.constant dense<0.000000e+00> : vector<6x128xf32>
    %48 = tpu.matmul %47, %4, %cst_29 {dimension_numbers = #tpu.dot_dimension_numbers<[1], [0], [0], [1], [0, 0, 1, 1], [], []>} : vector<6x16xbf16>, vector<16x128xbf16>, vector<6x128xf32> -> vector<6x128xf32>
    %49 = vector.broadcast %46 : vector<6x1xf32> to vector<6x128xf32>
    %50 = arith.mulf %48, %49 : vector<6x128xf32>
    %cst_30 = arith.constant 0.000000e+00 : f32
    %51 = vector.broadcast %cst_30 : f32 to vector<6x128xf32>
    %52 = arith.cmpf ogt, %50, %51 : vector<6x128xf32>
    %cst_31 = arith.constant 0.000000e+00 : f32
    %53 = vector.broadcast %cst_31 : f32 to vector<6x128xf32>
    %54 = arith.minimumf %50, %53 : vector<6x128xf32>
    %55 = math.exp %54 : vector<6x128xf32>
    %cst_32 = arith.constant 1.000000e+00 : f32
    %56 = vector.broadcast %cst_32 : f32 to vector<6x128xf32>
    %57 = arith.subf %55, %56 : vector<6x128xf32>
    %58 = arith.select %52, %50, %57 : vector<6x128xi1>, vector<6x128xf32>
    %59 = vector.shape_cast %5 : vector<6x16xf32> to vector<6x1x16xf32>
    %60 = vector.shape_cast %59 : vector<6x1x16xf32> to vector<6x1x16xf32>
    %61 = vector.broadcast %60 : vector<6x1x16xf32> to vector<6x16x16xf32>
    %cst_33 = arith.constant 0.000000e+00 : f32
    %62 = vector.broadcast %cst_33 : f32 to vector<6x16x16xf32>
    %63 = arith.cmpf ogt, %61, %62 : vector<6x16x16xf32>
    %64 = vector.shape_cast %25 : vector<16x16xf32> to vector<1x16x16xf32>
    %65 = vector.shape_cast %64 : vector<1x16x16xf32> to vector<1x16x16xf32>
    %66 = vector.broadcast %65 : vector<1x16x16xf32> to vector<6x16x16xf32>
    %cst_34 = arith.constant -1.000000e+09 : f32
    %67 = vector.broadcast %cst_34 : f32 to vector<6x16x16xf32>
    %68 = arith.select %63, %66, %67 : vector<6x16x16xi1>, vector<6x16x16xf32>
    %cst_35 = arith.constant dense<0xFF800000> : vector<6x16xf32>
    %69 = vector.multi_reduction <maximumf>, %68, %cst_35 [2] : vector<6x16x16xf32> to vector<6x16xf32>
    %70 = vector.shape_cast %69 : vector<6x16xf32> to vector<6x16x1xf32>
    %71 = vector.broadcast %70 : vector<6x16x1xf32> to vector<6x16x16xf32>
    %72 = arith.subf %68, %71 : vector<6x16x16xf32>
    %73 = math.exp %72 : vector<6x16x16xf32>
    %cst_36 = arith.constant dense<0.000000e+00> : vector<6x16xf32>
    %74 = vector.multi_reduction <add>, %73, %cst_36 [2] : vector<6x16x16xf32> to vector<6x16xf32>
    %75 = vector.shape_cast %74 : vector<6x16xf32> to vector<6x16x1xf32>
    %76 = tpu.reciprocal %75 {approx = true} : vector<6x16x1xf32> -> vector<6x16x1xf32>
    %77 = vector.broadcast %76 : vector<6x16x1xf32> to vector<6x16x16xf32>
    %78 = arith.mulf %73, %77 : vector<6x16x16xf32>
    %79 = vector.shape_cast %78 : vector<6x16x16xf32> to vector<96x16xf32>
    %80 = arith.truncf %79 : vector<96x16xf32> to vector<96x16xbf16>
    %cst_37 = arith.constant dense<0.000000e+00> : vector<96x128xf32>
    %81 = tpu.matmul %80, %4, %cst_37 {dimension_numbers = #tpu.dot_dimension_numbers<[1], [0], [0], [1], [0, 0, 1, 1], [], []>} : vector<96x16xbf16>, vector<16x128xbf16>, vector<96x128xf32> -> vector<96x128xf32>
    %82 = vector.shape_cast %81 : vector<96x128xf32> to vector<6x16x128xf32>
    %cst_38 = arith.constant 0.000000e+00 : f32
    %83 = vector.broadcast %cst_38 : f32 to vector<6x16x128xf32>
    %84 = arith.cmpf ogt, %82, %83 : vector<6x16x128xf32>
    %cst_39 = arith.constant 0.000000e+00 : f32
    %85 = vector.broadcast %cst_39 : f32 to vector<6x16x128xf32>
    %86 = arith.minimumf %82, %85 : vector<6x16x128xf32>
    %87 = math.exp %86 : vector<6x16x128xf32>
    %cst_40 = arith.constant 1.000000e+00 : f32
    %88 = vector.broadcast %cst_40 : f32 to vector<6x16x128xf32>
    %89 = arith.subf %87, %88 : vector<6x16x128xf32>
    %90 = arith.select %84, %82, %89 : vector<6x16x128xi1>, vector<6x16x128xf32>
    %91 = arith.truncf %58 : vector<6x128xf32> to vector<6x128xbf16>
    %cst_41 = arith.constant dense<0.000000e+00> : vector<6x256xf32>
    %92 = tpu.matmul %91, %10, %cst_41 {dimension_numbers = #tpu.dot_dimension_numbers<[1], [0], [0], [1], [0, 0, 1, 1], [], []>} : vector<6x128xbf16>, vector<128x256xbf16>, vector<6x256xf32> -> vector<6x256xf32>
    %93 = vector.broadcast %11 : vector<1x256xf32> to vector<6x256xf32>
    %94 = arith.addf %92, %93 : vector<6x256xf32>
    %95 = math.tanh %94 : vector<6x256xf32>
    %96 = vector.broadcast %12 : vector<1x256xf32> to vector<6x256xf32>
    %97 = arith.mulf %95, %96 : vector<6x256xf32>
    %cst_42 = arith.constant dense<0.000000e+00> : vector<6xf32>
    %98 = vector.multi_reduction <add>, %97, %cst_42 [1] : vector<6x256xf32> to vector<6xf32>
    %99 = vector.shape_cast %98 : vector<6xf32> to vector<6x1xf32>
    %cst_43 = arith.constant 0.000000e+00 : f32
    %100 = vector.broadcast %cst_43 : f32 to vector<6x16xf32>
    %101 = arith.cmpf ogt, %5, %100 : vector<6x16xf32>
    %cst_44 = arith.constant -1.000000e+09 : f32
    %102 = vector.shape_cast %99 : vector<6x1xf32> to vector<6x1xf32>
    %103 = vector.broadcast %102 : vector<6x1xf32> to vector<6x16xf32>
    %104 = vector.broadcast %cst_44 : f32 to vector<6x16xf32>
    %105 = arith.select %101, %103, %104 : vector<6x16xi1>, vector<6x16xf32>
    %cst_45 = arith.constant dense<0xFF800000> : vector<16xf32>
    %106 = vector.multi_reduction <maximumf>, %105, %cst_45 [0] : vector<6x16xf32> to vector<16xf32>
    %107 = vector.shape_cast %106 : vector<16xf32> to vector<1x16xf32>
    %108 = vector.broadcast %107 : vector<1x16xf32> to vector<6x16xf32>
    %109 = arith.subf %105, %108 : vector<6x16xf32>
    %110 = math.exp %109 : vector<6x16xf32>
    %cst_46 = arith.constant dense<0.000000e+00> : vector<16xf32>
    %111 = vector.multi_reduction <add>, %110, %cst_46 [0] : vector<6x16xf32> to vector<16xf32>
    %112 = vector.shape_cast %111 : vector<16xf32> to vector<1x16xf32>
    %113 = tpu.reciprocal %112 {approx = true} : vector<1x16xf32> -> vector<1x16xf32>
    %114 = vector.broadcast %113 : vector<1x16xf32> to vector<6x16xf32>
    %115 = arith.mulf %110, %114 : vector<6x16xf32>
    %116 = vector.shape_cast %115 : vector<6x16xf32> to vector<6x16x1xf32>
    %117 = vector.broadcast %116 : vector<6x16x1xf32> to vector<6x16x128xf32>
    %118 = arith.mulf %117, %90 : vector<6x16x128xf32>
    %cst_47 = arith.constant dense<0.000000e+00> : vector<16x128xf32>
    %119 = vector.multi_reduction <add>, %118, %cst_47 [0] : vector<6x16x128xf32> to vector<16x128xf32>
    %120 = arith.truncf %41 : vector<16x128xf32> to vector<16x128xbf16>
    %cst_48 = arith.constant dense<0.000000e+00> : vector<16x256xf32>
    %121 = tpu.matmul %120, %10, %cst_48 {dimension_numbers = #tpu.dot_dimension_numbers<[1], [0], [0], [1], [0, 0, 1, 1], [], []>} : vector<16x128xbf16>, vector<128x256xbf16>, vector<16x256xf32> -> vector<16x256xf32>
    %122 = vector.broadcast %11 : vector<1x256xf32> to vector<16x256xf32>
    %123 = arith.addf %121, %122 : vector<16x256xf32>
    %124 = math.tanh %123 : vector<16x256xf32>
    %125 = vector.broadcast %12 : vector<1x256xf32> to vector<16x256xf32>
    %126 = arith.mulf %124, %125 : vector<16x256xf32>
    %cst_49 = arith.constant dense<0.000000e+00> : vector<16xf32>
    %127 = vector.multi_reduction <add>, %126, %cst_49 [1] : vector<16x256xf32> to vector<16xf32>
    %128 = vector.shape_cast %127 : vector<16xf32> to vector<16x1xf32>
    %129 = arith.truncf %119 : vector<16x128xf32> to vector<16x128xbf16>
    %cst_50 = arith.constant dense<0.000000e+00> : vector<16x256xf32>
    %130 = tpu.matmul %129, %10, %cst_50 {dimension_numbers = #tpu.dot_dimension_numbers<[1], [0], [0], [1], [0, 0, 1, 1], [], []>} : vector<16x128xbf16>, vector<128x256xbf16>, vector<16x256xf32> -> vector<16x256xf32>
    %131 = vector.broadcast %11 : vector<1x256xf32> to vector<16x256xf32>
    %132 = arith.addf %130, %131 : vector<16x256xf32>
    %133 = math.tanh %132 : vector<16x256xf32>
    %134 = vector.broadcast %12 : vector<1x256xf32> to vector<16x256xf32>
    %135 = arith.mulf %133, %134 : vector<16x256xf32>
    %cst_51 = arith.constant dense<0.000000e+00> : vector<16xf32>
    %136 = vector.multi_reduction <add>, %135, %cst_51 [1] : vector<16x256xf32> to vector<16xf32>
    %137 = vector.shape_cast %136 : vector<16xf32> to vector<16x1xf32>
    %138 = arith.maximumf %128, %137 : vector<16x1xf32>
    %139 = arith.subf %128, %138 : vector<16x1xf32>
    %140 = math.exp %139 : vector<16x1xf32>
    %141 = arith.subf %137, %138 : vector<16x1xf32>
    %142 = math.exp %141 : vector<16x1xf32>
    %143 = arith.addf %140, %142 : vector<16x1xf32>
    %144 = tpu.reciprocal %143 {approx = true} : vector<16x1xf32> -> vector<16x1xf32>
    %145 = vector.broadcast %140 : vector<16x1xf32> to vector<16x128xf32>
    %146 = arith.mulf %145, %41 : vector<16x128xf32>
    %147 = vector.broadcast %142 : vector<16x1xf32> to vector<16x128xf32>
    %148 = arith.mulf %147, %119 : vector<16x128xf32>
    %149 = arith.addf %146, %148 : vector<16x128xf32>
    %150 = vector.broadcast %144 : vector<16x1xf32> to vector<16x128xf32>
    %151 = arith.mulf %149, %150 : vector<16x128xf32>
    %c0_52 = arith.constant 0 : index
    %c0_53 = arith.constant 0 : index
    %c0_54 = arith.constant 0 : index
    %152 = vector.load %arg10[%c0_52, %c0_53, %c0_54] : memref<1x16x128xf32, #tpu.memory_space<vmem>>, vector<1x16x128xf32>
    %153 = vector.shape_cast %152 : vector<1x16x128xf32> to vector<16x128xf32>
    %154 = vector.shape_cast %151 : vector<16x128xf32> to vector<1x16x128xf32>
    tpu.vector_store %arg10[%c0_52, %c0_53, %c0_54], %154 {strides = array<i32>} : memref<1x16x128xf32, #tpu.memory_space<vmem>>, vector<1x16x128xf32>,
    return
  }
  func.func @transform_0(%arg0: i32) -> (i32, i32, i32) {
    %c0_i32 = arith.constant 0 : i32
    %c0_i32_0 = arith.constant 0 : i32
    %c0_i32_1 = arith.constant 0 : i32
    return %arg0, %c0_i32, %c0_i32_0 : i32, i32, i32
  }
  func.func @transform_1(%arg0: i32) -> (i32, i32) {
    %c0_i32 = arith.constant 0 : i32
    %c0_i32_0 = arith.constant 0 : i32
    %c0_i32_1 = arith.constant 0 : i32
    return %c0_i32, %c0_i32_0 : i32, i32
  }
  func.func @transform_2(%arg0: i32) -> (i32, i32) {
    %c0_i32 = arith.constant 0 : i32
    %c0_i32_0 = arith.constant 0 : i32
    %c0_i32_1 = arith.constant 0 : i32
    return %c0_i32, %c0_i32_0 : i32, i32
  }
  func.func @transform_3(%arg0: i32) -> (i32, i32) {
    %c0_i32 = arith.constant 0 : i32
    %c0_i32_0 = arith.constant 0 : i32
    %c0_i32_1 = arith.constant 0 : i32
    return %c0_i32, %c0_i32_0 : i32, i32
  }
  func.func @transform_4(%arg0: i32) -> (i32, i32) {
    %c0_i32 = arith.constant 0 : i32
    %c0_i32_0 = arith.constant 0 : i32
    %c0_i32_1 = arith.constant 0 : i32
    return %c0_i32, %c0_i32_0 : i32, i32
  }
  func.func @transform_5(%arg0: i32) -> (i32, i32) {
    %c0_i32 = arith.constant 0 : i32
    %c0_i32_0 = arith.constant 0 : i32
    %c0_i32_1 = arith.constant 0 : i32
    return %c0_i32, %c0_i32_0 : i32, i32
  }
  func.func @transform_6(%arg0: i32) -> (i32, i32) {
    %c0_i32 = arith.constant 0 : i32
    %c0_i32_0 = arith.constant 0 : i32
    %c0_i32_1 = arith.constant 0 : i32
    return %c0_i32, %c0_i32_0 : i32, i32
  }
  func.func @transform_7(%arg0: i32) -> (i32, i32) {
    %c0_i32 = arith.constant 0 : i32
    %c0_i32_0 = arith.constant 0 : i32
    %c0_i32_1 = arith.constant 0 : i32
    return %c0_i32, %c0_i32_0 : i32, i32
  }
  func.func @transform_8(%arg0: i32) -> (i32, i32) {
    %c0_i32 = arith.constant 0 : i32
    %c0_i32_0 = arith.constant 0 : i32
    %c0_i32_1 = arith.constant 0 : i32
    return %c0_i32, %c0_i32_0 : i32, i32
  }
  func.func @transform_9(%arg0: i32) -> (i32, i32, i32) {
    %c0_i32 = arith.constant 0 : i32
    %c0_i32_0 = arith.constant 0 : i32
    %c0_i32_1 = arith.constant 0 : i32
    return %arg0, %c0_i32, %c0_i32_0 : i32, i32, i32
  }
}

</mosaic_0001>

<llo_original>
// kernel: hgat_forward.1
$region0: #{hgat_forward.1}
  #allocation0 [shape = 'u32[]', space=smem, size = 0x4, offset = 0x4, fixed_abs, tag = 'smem constant byte address 0x4 - core index']
  #allocation1 [shape = 'u32[144,128]{1,0:T(1,128)}', space=vmem, size = 0x12000, scoped, tag = 'internal scratch']
  %s0 = inlined_call_operand.vmem [shape: f32[2,16,8], index: 0, kind: input, shape index: {}]
  %s1 = inlined_call_operand.vmem [shape: f32[8,128], index: 1, kind: input, shape index: {}]
  %s2 = inlined_call_operand.vmem [shape: f32[6,16], index: 2, kind: input, shape index: {}]
  %s3 = inlined_call_operand.vmem [shape: f32[16,16], index: 3, kind: input, shape index: {}]
  %s4 = inlined_call_operand.vmem [shape: f32[1,128], index: 4, kind: input, shape index: {}]
  %s5 = inlined_call_operand.vmem [shape: f32[1,128], index: 5, kind: input, shape index: {}]
  %s6 = inlined_call_operand.hbm [shape: f32[128,256], index: 6, kind: input, shape index: {}]
  %s7 = inlined_call_operand.vmem [shape: f32[1,256], index: 7, kind: input, shape index: {}]
  %s8 = inlined_call_operand.vmem [shape: f32[1,256], index: 8, kind: input, shape index: {}]
  %s9 = inlined_call_operand.hbm [shape: f32[2,16,128], index: 9, kind: output, shape index: {}]
  %s10 = sld [smem:[#allocation0]]
  $region73: #{hgat_forward.1} parent=0
    _
  %s12 = ssub.s32 1, %s10
  %s13 = scalar_select 0, %s12, %s10
  $region1: #{hgat_forward.1} parent=0
    #allocation2 [shape = 'u8[131072]{0}', space=vmem, size = 0x20000, scoped, tag = 'input window, operand 6, single buffered']
    #allocation3 [shape = 's32[2]{0}', space=sflag, size = 0x8, scoped, tag = 'scoped memory for hgat_forward.1']
    #allocation4 [shape = 's32[2]{0}', space=sflag, size = 0x8, scoped, tag = 'scoped memory for hgat_forward.1']
    #allocation5 [shape = 'u8[16384]{0}', space=vmem, size = 0x4000, scoped, tag = 'output window, operand 0']
    %14 = vsyncpa [#allocation3], 0
    %15 = vsyncpa [#allocation4], 0
    %s16 = scalar_lea.sflag [#allocation4], 1
    %17 = vsyncpa %s16, 0
    loop: start=0, step=1, limit=4
    $region2: #{hgat_forward.1} parent=1 // loop_pre_header
      _
    $region3: #{hgat_forward.1} parent=1 // loop_header
      %s19 = sphi 0, %s23
      %p20 = scmp.ge.s32.totalorder %s19, 4
      %s29 = sphi 0, %s31
      %s32 = sphi 0, %s29
      %s33 = sphi 0, %s32
      %s49 = sphi 0, %s33
      %s53 = sphi 0, %s53
      %s55 = sphi 0, %s53
      %s56 = sphi 0, %s55
      %s70 = sphi 0, %s56
      %s74 = sphi 0, %s74
      %s76 = sphi 0, %s74
      %s77 = sphi 0, %s76
      %s91 = sphi 0, %s77
      %s95 = sphi 0, %s95
      %s97 = sphi 0, %s95
      %s98 = sphi 0, %s97
      %s112 = sphi 0, %s98
      %s116 = sphi 0, %s116
      %s118 = sphi 0, %s116
      %s119 = sphi 0, %s118
      %s133 = sphi 0, %s119
      %s137 = sphi 0, %s137
      %s139 = sphi 0, %s137
      %s140 = sphi 0, %s139
      %s154 = sphi 0, %s140
      %s158 = sphi 0, %s158
      %s160 = sphi 0, %s158
      %s161 = sphi 0, %s160
      %s175 = sphi 0, %s161
      %s179 = sphi 0, %s179
      %s181 = sphi 0, %s179
      %s182 = sphi 0, %s181
      %s196 = sphi 0, %s182
      %s200 = sphi 0, %s200
      %s202 = sphi 0, %s200
      %s203 = sphi 0, %s202
      %s217 = sphi 0, %s203
      %s223 = sphi 0, %s225
      %s226 = sphi 0, %s223
      %s227 = sphi 0, %s226
      %s243 = sphi 0, %s227
    $region4: #{hgat_forward.1} parent=1 // loop_header_branch
      %22 = sbr.rel (%p20) target = $region8
    $region5: #{hgat_forward.1} parent=1 // loop_body
      %s24 = ssub.s32 %s19, 1
      %s25 = ssub.s32 %s19, 2
      %s26 = sadd.s32 %s19, 1
      %s27 = ssub.s32 %s19, %s26
      %p28 = scmp.eq.s32.totalorder %s27, 0
      %s30 = sadd.s32 %s29, 1
      %s31 = scalar_select %p28, %s29, %s30
      %p34 = pneg %p28
      %p35 = scmp.eq.s32.totalorder %s19, 1
      %p36 = por %p34, %p35
      %p37 = scmp.ne.s32.totalorder %s29, %s32
      %p38 = scmp.eq.s32.totalorder %s19, 0
      %p39 = por %p37, %p38
      %p40 = scmp.ne.s32.totalorder %s29, %s32
      %p41 = scmp.eq.s32.totalorder %s24, 1
      %p42 = por %p40, %p41
      %p43 = scmp.ne.s32.totalorder %s32, %s33
      %p44 = scmp.eq.s32.totalorder %s24, 0
      %p45 = por %p43, %p44
      %p46 = scmp.ne.s32.totalorder %s32, %s33
      %p47 = scmp.eq.s32.totalorder %s25, 1
      %p48 = por %p46, %p47
      %p50 = scmp.ne.s32.totalorder %s33, %s49
      %p51 = scmp.eq.s32.totalorder %s25, 0
      %p52 = por %p50, %p51
      %s54 = sadd.s32 %s53, 1
      %p57 = scmp.eq.s32.totalorder %s19, 1
      %p58 = scmp.ne.s32.totalorder %s53, %s55
      %p59 = scmp.eq.s32.totalorder %s19, 0
      %p60 = por %p58, %p59
      %p61 = scmp.ne.s32.totalorder %s53, %s55
      %p62 = scmp.eq.s32.totalorder %s24, 1
      %p63 = por %p61, %p62
      %p64 = scmp.ne.s32.totalorder %s55, %s56
      %p65 = scmp.eq.s32.totalorder %s24, 0
      %p66 = por %p64, %p65
      %p67 = scmp.ne.s32.totalorder %s55, %s56
      %p68 = scmp.eq.s32.totalorder %s25, 1
      %p69 = por %p67, %p68
      %p71 = scmp.ne.s32.totalorder %s56, %s70
      %p72 = scmp.eq.s32.totalorder %s25, 0
      %p73 = por %p71, %p72
      %s75 = sadd.s32 %s74, 1
      %p78 = scmp.eq.s32.totalorder %s19, 1
      %p79 = scmp.ne.s32.totalorder %s74, %s76
      %p80 = scmp.eq.s32.totalorder %s19, 0
      %p81 = por %p79, %p80
      %p82 = scmp.ne.s32.totalorder %s74, %s76
      %p83 = scmp.eq.s32.totalorder %s24, 1
      %p84 = por %p82, %p83
      %p85 = scmp.ne.s32.totalorder %s76, %s77
      %p86 = scmp.eq.s32.totalorder %s24, 0
      %p87 = por %p85, %p86
      %p88 = scmp.ne.s32.totalorder %s76, %s77
      %p89 = scmp.eq.s32.totalorder %s25, 1
      %p90 = por %p88, %p89
      %p92 = scmp.ne.s32.totalorder %s77, %s91
      %p93 = scmp.eq.s32.totalorder %s25, 0
      %p94 = por %p92, %p93
      %s96 = sadd.s32 %s95, 1
      %p99 = scmp.eq.s32.totalorder %s19, 1
      %p100 = scmp.ne.s32.totalorder %s95, %s97
      %p101 = scmp.eq.s32.totalorder %s19, 0
      %p102 = por %p100, %p101
      %p103 = scmp.ne.s32.totalorder %s95, %s97
      %p104 = scmp.eq.s32.totalorder %s24, 1
      %p105 = por %p103, %p104
      %p106 = scmp.ne.s32.totalorder %s97, %s98
      %p107 = scmp.eq.s32.totalorder %s24, 0
      %p108 = por %p106, %p107
      %p109 = scmp.ne.s32.totalorder %s97, %s98
      %p110 = scmp.eq.s32.totalorder %s25, 1
      %p111 = por %p109, %p110
      %p113 = scmp.ne.s32.totalorder %s98, %s112
      %p114 = scmp.eq.s32.totalorder %s25, 0
      %p115 = por %p113, %p114
      %s117 = sadd.s32 %s116, 1
      %p120 = scmp.eq.s32.totalorder %s19, 1
      %p121 = scmp.ne.s32.totalorder %s116, %s118
      %p122 = scmp.eq.s32.totalorder %s19, 0
      %p123 = por %p121, %p122
      %p124 = scmp.ne.s32.totalorder %s116, %s118
      %p125 = scmp.eq.s32.totalorder %s24, 1
      %p126 = por %p124, %p125
      %p127 = scmp.ne.s32.totalorder %s118, %s119
      %p128 = scmp.eq.s32.totalorder %s24, 0
      %p129 = por %p127, %p128
      %p130 = scmp.ne.s32.totalorder %s118, %s119
      %p131 = scmp.eq.s32.totalorder %s25, 1
      %p132 = por %p130, %p131
      %p134 = scmp.ne.s32.totalorder %s119, %s133
      %p135 = scmp.eq.s32.totalorder %s25, 0
      %p136 = por %p134, %p135
      %s138 = sadd.s32 %s137, 1
      %p141 = scmp.eq.s32.totalorder %s19, 1
      %p142 = scmp.ne.s32.totalorder %s137, %s139
      %p143 = scmp.eq.s32.totalorder %s19, 0
      %p144 = por %p142, %p143
      %p145 = scmp.ne.s32.totalorder %s137, %s139
      %p146 = scmp.eq.s32.totalorder %s24, 1
      %p147 = por %p145, %p146
      %p148 = scmp.ne.s32.totalorder %s139, %s140
      %p149 = scmp.eq.s32.totalorder %s24, 0
      %p150 = por %p148, %p149
      %p151 = scmp.ne.s32.totalorder %s139, %s140
      %p152 = scmp.eq.s32.totalorder %s25, 1
      %p153 = por %p151, %p152
      %p155 = scmp.ne.s32.totalorder %s140, %s154
      %p156 = scmp.eq.s32.totalorder %s25, 0
      %p157 = por %p155, %p156
      %s159 = sadd.s32 %s158, 1
      %p162 = scmp.eq.s32.totalorder %s19, 1
      %p163 = scmp.ne.s32.totalorder %s158, %s160
      %p164 = scmp.eq.s32.totalorder %s19, 0
      %p165 = por %p163, %p164
      %p166 = scmp.ne.s32.totalorder %s158, %s160
      %p167 = scmp.eq.s32.totalorder %s24, 1
      %p168 = por %p166, %p167
      %p169 = scmp.ne.s32.totalorder %s160, %s161
      %p170 = scmp.eq.s32.totalorder %s24, 0
      %p171 = por %p169, %p170
      %p172 = scmp.ne.s32.totalorder %s160, %s161
      %p173 = scmp.eq.s32.totalorder %s25, 1
      %p174 = por %p172, %p173
      %p176 = scmp.ne.s32.totalorder %s161, %s175
      %p177 = scmp.eq.s32.totalorder %s25, 0
      %p178 = por %p176, %p177
      %s180 = sadd.s32 %s179, 1
      %p183 = scmp.eq.s32.totalorder %s19, 1
      %p184 = scmp.ne.s32.totalorder %s179, %s181
      %p185 = scmp.eq.s32.totalorder %s19, 0
      %p186 = por %p184, %p185
      %p187 = scmp.ne.s32.totalorder %s179, %s181
      %p188 = scmp.eq.s32.totalorder %s24, 1
      %p189 = por %p187, %p188
      %p190 = scmp.ne.s32.totalorder %s181, %s182
      %p191 = scmp.eq.s32.totalorder %s24, 0
      %p192 = por %p190, %p191
      %p193 = scmp.ne.s32.totalorder %s181, %s182
      %p194 = scmp.eq.s32.totalorder %s25, 1
      %p195 = por %p193, %p194
      %p197 = scmp.ne.s32.totalorder %s182, %s196
      %p198 = scmp.eq.s32.totalorder %s25, 0
      %p199 = por %p197, %p198
      %s201 = sadd.s32 %s200, 1
      %p204 = scmp.eq.s32.totalorder %s19, 1
      %p205 = scmp.ne.s32.totalorder %s200, %s202
      %p206 = scmp.eq.s32.totalorder %s19, 0
      %p207 = por %p205, %p206
      %p208 = scmp.ne.s32.totalorder %s200, %s202
      %p209 = scmp.eq.s32.totalorder %s24, 1
      %p210 = por %p208, %p209
      %p211 = scmp.ne.s32.totalorder %s202, %s203
      %p212 = scmp.eq.s32.totalorder %s24, 0
      %p213 = por %p211, %p212
      %p214 = scmp.ne.s32.totalorder %s202, %s203
      %p215 = scmp.eq.s32.totalorder %s25, 1
      %p216 = por %p214, %p215
      %p218 = scmp.ne.s32.totalorder %s203, %s217
      %p219 = scmp.eq.s32.totalorder %s25, 0
      %p220 = por %p218, %p219
      %s221 = ssub.s32 %s19, %s26
      %p222 = scmp.eq.s32.totalorder %s221, 0
      %s224 = sadd.s32 %s223, 1
      %s225 = scalar_select %p222, %s223, %s224
      %p228 = pneg %p222
      %p229 = scmp.eq.s32.totalorder %s19, 1
      %p230 = por %p228, %p229
      %p231 = scmp.ne.s32.totalorder %s223, %s226
      %p232 = scmp.eq.s32.totalorder %s19, 0
      %p233 = por %p231, %p232
      %p234 = scmp.ne.s32.totalorder %s223, %s226
      %p235 = scmp.eq.s32.totalorder %s24, 1
      %p236 = por %p234, %p235
      %p237 = scmp.ne.s32.totalorder %s226, %s227
      %p238 = scmp.eq.s32.totalorder %s24, 0
      %p239 = por %p237, %p238
      %p240 = scmp.ne.s32.totalorder %s226, %s227
      %p241 = scmp.eq.s32.totalorder %s25, 1
      %p242 = por %p240, %p241
      %p244 = scmp.ne.s32.totalorder %s227, %s243
      %p245 = scmp.eq.s32.totalorder %s25, 0
      %p246 = por %p244, %p245
      %p247 = scmp.le.s32.totalorder 1, %s19
      %p248 = scmp.lt.s32.totalorder %s19, 3
      %p249 = pnand %p247, %p248
      %p250 = pneg %p249
      // Predicated region
      $region9: #{hgat_forward.1} parent=5 // pred_check
        _
      $region10: #{hgat_forward.1} parent=5 // pred_check_branch
        %252 = sbr.rel (%p249) target = $region12
      $region11: #{hgat_forward.1} parent=5 // pred_region
        %s253 = ssub.s32 %s19, 1
        // Predicated region
        $region13: #{hgat_forward.1} parent=11 // pred_check
          %p254 = pneg %p66
        $region14: #{hgat_forward.1} parent=11 // pred_check_branch
          %256 = sbr.rel (%p254) target = $region16
        $region15: #{hgat_forward.1} parent=11 // pred_region
          _
        $region16: #{hgat_forward.1} parent=11 // pred_fallthru
          _
        // Predicated region
        $region17: #{hgat_forward.1} parent=11 // pred_check
          %p257 = pneg %p87
        $region18: #{hgat_forward.1} parent=11 // pred_check_branch
          %259 = sbr.rel (%p257) target = $region20
        $region19: #{hgat_forward.1} parent=11 // pred_region
          _
        $region20: #{hgat_forward.1} parent=11 // pred_fallthru
          _
        // Predicated region
        $region21: #{hgat_forward.1} parent=11 // pred_check
          %p260 = pneg %p108
        $region22: #{hgat_forward.1} parent=11 // pred_check_branch
          %262 = sbr.rel (%p260) target = $region24
        $region23: #{hgat_forward.1} parent=11 // pred_region
          _
        $region24: #{hgat_forward.1} parent=11 // pred_fallthru
          _
        // Predicated region
        $region25: #{hgat_forward.1} parent=11 // pred_check
          %p263 = pneg %p129
        $region26: #{hgat_forward.1} parent=11 // pred_check_branch
          %265 = sbr.rel (%p263) target = $region28
        $region27: #{hgat_forward.1} parent=11 // pred_region
          _
        $region28: #{hgat_forward.1} parent=11 // pred_fallthru
          _
        // Predicated region
        $region29: #{hgat_forward.1} parent=11 // pred_check
          %p266 = pneg %p150
        $region30: #{hgat_forward.1} parent=11 // pred_check_branch
          %268 = sbr.rel (%p266) target = $region32
        $region31: #{hgat_forward.1} parent=11 // pred_region
          _
        $region32: #{hgat_forward.1} parent=11 // pred_fallthru
          _
        // Predicated region
        $region33: #{hgat_forward.1} parent=11 // pred_check
          %p269 = pneg %p171
        $region34: #{hgat_forward.1} parent=11 // pred_check_branch
          %271 = sbr.rel (%p269) target = $region36
        $region35: #{hgat_forward.1} parent=11 // pred_region
          %s273 = ssub.s32 4096, 4096
          %274 = vsyncadd [#allocation3], %s273
          %s275 = sshll.u32 [#allocation2], 4
          %s276 = int_to_ptr.vmem [resolvable:$true] %s275
          %281 = dma.hbm_to_vmem [thread:$0]  %s6, 4096, %s276, [#allocation3], 256, 256, 16
        $region36: #{hgat_forward.1} parent=11 // pred_fallthru
          _
        // Predicated region
        $region37: #{hgat_forward.1} parent=11 // pred_check
          %p282 = pneg %p192
        $region38: #{hgat_forward.1} parent=11 // pred_check_branch
          %284 = sbr.rel (%p282) target = $region40
        $region39: #{hgat_forward.1} parent=11 // pred_region
          _
        $region40: #{hgat_forward.1} parent=11 // pred_fallthru
          _
        // Predicated region
        $region41: #{hgat_forward.1} parent=11 // pred_check
          %p285 = pneg %p213
        $region42: #{hgat_forward.1} parent=11 // pred_check_branch
          %287 = sbr.rel (%p285) target = $region44
        $region43: #{hgat_forward.1} parent=11 // pred_region
          _
        $region44: #{hgat_forward.1} parent=11 // pred_fallthru
          _
      $region12: #{hgat_forward.1} parent=5 // pred_fallthru
        _
      %p288 = scmp.lt.s32.totalorder %s19, 2
      // Predicated region
      $region45: #{hgat_forward.1} parent=5 // pred_check
        %p289 = pneg %p288
      $region46: #{hgat_forward.1} parent=5 // pred_check_branch
        %291 = sbr.rel (%p289) target = $region48
      $region47: #{hgat_forward.1} parent=5 // pred_region
        // Predicated region
        $region49: #{hgat_forward.1} parent=47 // pred_check
          %p292 = pneg %p39
        $region50: #{hgat_forward.1} parent=47 // pred_check_branch
          %294 = sbr.rel (%p292) target = $region52
        $region51: #{hgat_forward.1} parent=47 // pred_region
          %p295 = scmp.lt.s32.totalorder %s19, 1
          %s296 = scalar_select %p295, %s19, 1
          %s297 = smul.addr %s296, 2
          %s298 = smul.addr %s297, 8
          %s299 = scalar_lea.vmem %s0, %s298
        $region52: #{hgat_forward.1} parent=47 // pred_fallthru
          _
      $region48: #{hgat_forward.1} parent=5 // pred_fallthru
        _
      %p300 = scmp.le.s32.totalorder 1, %s19
      %p301 = scmp.lt.s32.totalorder %s19, 3
      %p302 = pnand %p300, %p301
      %p303 = pneg %p302
      // Predicated region
      $region53: #{hgat_forward.1} parent=5 // pred_check
        _
      $region54: #{hgat_forward.1} parent=5 // pred_check_branch
        %305 = sbr.rel (%p302) target = $region56
      $region55: #{hgat_forward.1} parent=5 // pred_region
        %s306 = ssub.s32 %s19, 1
        // Predicated region
        $region57: #{hgat_forward.1} parent=55 // pred_check
          %p307 = pneg %p171
        $region58: #{hgat_forward.1} parent=55 // pred_check_branch
          %309 = sbr.rel (%p307) target = $region60
        $region59: #{hgat_forward.1} parent=55 // pred_region
          %310 = dma.done [#allocation3], 4096
        $region60: #{hgat_forward.1} parent=55 // pred_fallthru
          _
        %p311 = scmp.lt.s32.totalorder %s24, 1
        %s312 = scalar_select %p311, %s24, 1
        %s313 = smul.addr %s312, 2
        %s314 = smul.addr %s313, 8
        %s315 = scalar_lea.vmem %s0, %s314
        %p316 = pneg %p45
        %p317 = pneg %p42
        %p318 = pneg %p66
        %p319 = pneg %p63
        %p320 = pneg %p87
        %p321 = pneg %p84
        %p322 = pneg %p108
        %p323 = pneg %p105
        %p324 = pneg %p129
        %p325 = pneg %p126
        %p326 = pneg %p150
        %p327 = pneg %p147
        %p328 = pneg %p171
        %p329 = pneg %p168
        %p330 = pneg %p192
        %p331 = pneg %p189
        %p332 = pneg %p213
        %p333 = pneg %p210
        %p334 = pneg %p239
        %p335 = pneg %p236
        %s336 = sand.u32 %s226, 1
        %s337 = scalar_lea.sflag [#allocation4], %s336
        %s338 = sand.u32 %s226, 1
        %s339 = smul.addr %s338, 16
        %s340 = scalar_lea.vmem [#allocation5], %s339
        %p341 = scmp.lt.s32.totalorder %s24, 1
        %s342 = scalar_select %p341, %s24, 1
        %s343 = smul.addr %s342, 2
        %s344 = smul.addr %s343, 8
        %s345 = scalar_lea.vmem %s0, %s344
        %v347 = vld [vmem:[%s345] sm:$0xff]
        %v348 = vld [vmem:[%s345 + $0x8] sm:$0xff]
        %v349 = vld [vmem:[%s1] sm:$0xff]
        %vm350 = vcmask 64512
        %v352 = vsel %vm350, %v347, 0
        %v355 = vsel %vm350, %v348, 0
        %357 = vmatprep.subr.mxu0 0.0
        %358 = vmatpush1.msra.mxu0 %v349
        %359 = vmatprep.subr.mxu0 0.0
        %360 = vmatpush1.msra.mxu0 0.0
        %361 = vmatprep.subr.mxu0 0.0
        %362 = vmatpush1.msra.mxu0 0.0
        %363 = vmatprep.subr.mxu0 0.0
        %364 = vmatpush1.msra.mxu0 0.0
        %365 = vmatprep.subr.mxu0 0.0
        %366 = vmatpush1.msra.mxu0 0.0
        %367 = vmatprep.subr.mxu0 0.0
        %368 = vmatpush1.msra.mxu0 0.0
        %369 = vmatprep.subr.mxu0 0.0
        %370 = vmatpush1.msra.mxu0 0.0
        %371 = vmatprep.subr.mxu0 0.0
        %372 = vmatpush1.msra.mxu0 0.0
        %373 = vmatprep.subr.mxu0 0.0
        %374 = vmatpush1.msra.mxu0 0.0
        %375 = vmatprep.subr.mxu0 0.0
        %376 = vmatpush1.msra.mxu0 0.0
        %377 = vmatprep.subr.mxu0 0.0
        %378 = vmatpush1.msra.mxu0 0.0
        %379 = vmatprep.subr.mxu0 0.0
        %380 = vmatpush1.msra.mxu0 0.0
        %381 = vmatprep.subr.mxu0 0.0
        %382 = vmatpush1.msra.mxu0 0.0
        %383 = vmatprep.subr.mxu0 0.0
        %384 = vmatpush1.msra.mxu0 0.0
        %385 = vmatprep.subr.mxu0 0.0
        %386 = vmatpush1.msra.mxu0 0.0
        %387 = vmatprep.subr.mxu0 0.0
        %388 = vmatpush1.msra.mxu0 0.0
        %389 = vmatprep.subr.mxu0 0.0
        %390 = vmatpush1.msra.mxu0 0.0
        %391 = vmatprep.subr.mxu0 0.0
        %392 = vmatpush1.msra.mxu0 0.0
        %393 = vmatprep.subr.mxu0 0.0
        %394 = vmatpush1.msra.mxu0 0.0
        %395 = vmatprep.subr.mxu0 0.0
        %396 = vmatpush1.msra.mxu0 0.0
        %397 = vmatprep.subr.mxu0 0.0
        %398 = vmatpush1.msra.mxu0 0.0
        %399 = vmatprep.subr.mxu0 0.0
        %400 = vmatpush1.msra.mxu0 0.0
        %401 = vmatprep.subr.mxu0 0.0
        %402 = vmatpush1.msra.mxu0 0.0
        %403 = vmatprep.subr.mxu0 0.0
        %404 = vmatpush1.msra.mxu0 0.0
        %405 = vmatprep.subr.mxu0 0.0
        %406 = vmatpush1.msra.mxu0 0.0
        %407 = vmatprep.subr.mxu0 0.0
        %408 = vmatpush1.msra.mxu0 0.0
        %409 = vmatprep.subr.mxu0 0.0
        %410 = vmatpush1.msra.mxu0 0.0
        %411 = vmatprep.subr.mxu0 0.0
        %412 = vmatpush1.msra.mxu0 0.0
        %413 = vmatprep.subr.mxu0 0.0
        %414 = vmatpush1.msra.mxu0 0.0
        %415 = vmatprep.subr.mxu0 0.0
        %416 = vmatpush1.msra.mxu0 0.0
        %417 = vmatprep.subr.mxu0 0.0
        %418 = vmatpush1.msra.mxu0 0.0
        %419 = vmatprep.subr.mxu0 0.0
        %420 = vmatpush1.msra.mxu0 0.0
        %421 = vmatprep.mubr.f32.mxu0 0.0
        %422 = vmatmul.mubr.f32.gmra.mrb[0].mxu0 %v352
        %v423 = vpop.f32.mrb[0].mxu0
        %v424 = vadd.f32 0.0, %v423
        %v425 = vpop.f32.mrb[0].mxu0
        %426 = vmatprep.mubr.f32.mxu0 0.0
        %427 = vmatmul.mubr.f32.gmra.mrb[0].mxu0 %v355
        %v428 = vpop.f32.mrb[0].mxu0
        %v429 = vadd.f32 0.0, %v428
        %v430 = vpop.f32.mrb[0].mxu0
        %431 = vdwg.mxu0
        %v432 = vpack.c.bf16 %v429, %v424
        %v433 = vld [vmem:[%s2] sm:$0x3f]
        %v434 = vld [vmem:[%s3] sm:$0xff]
        %v435 = vld [vmem:[%s3 + $0x8] sm:$0xff]
        %v436 = vld [vmem:[%s4] sm:$0x1]
        %v437 = vld [vmem:[%s5] sm:$0x1]
        %v438 = vld [vmem:[#allocation2] sm:$0xff]
        %v439 = vld [vmem:[#allocation2 + $0x8] sm:$0xff]
        %v440 = vld [vmem:[#allocation2 + $0x10] sm:$0xff]
        %v441 = vld [vmem:[#allocation2 + $0x18] sm:$0xff]
        %v442 = vld [vmem:[#allocation2 + $0x20] sm:$0xff]
        %v443 = vld [vmem:[#allocation2 + $0x28] sm:$0xff]
        %v444 = vld [vmem:[#allocation2 + $0x30] sm:$0xff]
        %v445 = vld [vmem:[#allocation2 + $0x38] sm:$0xff]
        %v446 = vld [vmem:[#allocation2 + $0x40] sm:$0xff]
        %v447 = vld [vmem:[#allocation2 + $0x48] sm:$0xff]
        %v448 = vld [vmem:[#allocation2 + $0x50] sm:$0xff]
        %v449 = vld [vmem:[#allocation2 + $0x58] sm:$0xff]
        %v450 = vld [vmem:[#allocation2 + $0x60] sm:$0xff]
        %v451 = vld [vmem:[#allocation2 + $0x68] sm:$0xff]
        %v452 = vld [vmem:[#allocation2 + $0x70] sm:$0xff]
        %v453 = vld [vmem:[#allocation2 + $0x78] sm:$0xff]
        %v454 = vld [vmem:[#allocation2 + $0x80] sm:$0xff]
        %v455 = vld [vmem:[#allocation2 + $0x88] sm:$0xff]
        %v456 = vld [vmem:[#allocation2 + $0x90] sm:$0xff]
        %v457 = vld [vmem:[#allocation2 + $0x98] sm:$0xff]
        %v458 = vld [vmem:[#allocation2 + $0xa0] sm:$0xff]
        %v459 = vld [vmem:[#allocation2 + $0xa8] sm:$0xff]
        %v460 = vld [vmem:[#allocation2 + $0xb0] sm:$0xff]
        %v461 = vld [vmem:[#allocation2 + $0xb8] sm:$0xff]
        %v462 = vld [vmem:[#allocation2 + $0xc0] sm:$0xff]
        %v463 = vld [vmem:[#allocation2 + $0xc8] sm:$0xff]
        %v464 = vld [vmem:[#allocation2 + $0xd0] sm:$0xff]
        %v465 = vld [vmem:[#allocation2 + $0xd8] sm:$0xff]
        %v466 = vld [vmem:[#allocation2 + $0xe0] sm:$0xff]
        %v467 = vld [vmem:[#allocation2 + $0xe8] sm:$0xff]
        %v468 = vld [vmem:[#allocation2 + $0xf0] sm:$0xff]
        %v469 = vld [vmem:[#allocation2 + $0xf8] sm:$0xff]
        %v470 = vpack.c.bf16 %v440, %v438
        %v471 = vpack.c.bf16 %v441, %v439
        %v472 = vpack.c.bf16 %v444, %v442
        %v473 = vpack.c.bf16 %v445, %v443
        %v474 = vpack.c.bf16 %v448, %v446
        %v475 = vpack.c.bf16 %v449, %v447
        %v476 = vpack.c.bf16 %v452, %v450
        %v477 = vpack.c.bf16 %v453, %v451
        %v478 = vpack.c.bf16 %v456, %v454
        %v479 = vpack.c.bf16 %v457, %v455
        %v480 = vpack.c.bf16 %v460, %v458
        %v481 = vpack.c.bf16 %v461, %v459
        %v482 = vpack.c.bf16 %v464, %v462
        %v483 = vpack.c.bf16 %v465, %v463
        %v484 = vpack.c.bf16 %v468, %v466
        %v485 = vpack.c.bf16 %v469, %v467
        %v486 = vld [vmem:[%s7] sm:$0x3]
        %v487 = vld [vmem:[%s8] sm:$0x3]
        %v489 = vlaneseq
        %v490 = vshrl.u32 %v489, 7
        %v491 = vsub.s32 0, %v490
        %v492 = vrot.slane %v436, %v491
        %v494 = vmul.f32 %v424, %v492
        %v495 = vmul.f32 %v429, %v492
        %496 = vadd.xlane.f32.xlu0 %v494
        %v497 = vpop.xlane.xlu0 %496
        %498 = vadd.xlane.f32.xlu0 %v495
        %v499 = vpop.xlane.xlu0 %498
        %500 = vmatprep.subr.mxu0 0.0
        %501 = vmatpush1.xpose.msra.mxu0 %v424
        %502 = vmatprep.subr.mxu0 0.0
        %503 = vmatpush1.xpose.msra.mxu0 %v429
        %504 = vmatprep.subr.mxu0 0.0
        %505 = vmatpush1.xpose.msra.mxu0 0.0
        %506 = vmatprep.subr.mxu0 0.0
        %507 = vmatpush1.xpose.msra.mxu0 0.0
        %508 = vmatprep.subr.mxu0 0.0
        %509 = vmatpush1.xpose.msra.mxu0 0.0
        %510 = vmatprep.subr.mxu0 0.0
        %511 = vmatpush1.xpose.msra.mxu0 0.0
        %512 = vmatprep.subr.mxu0 0.0
        %513 = vmatpush1.xpose.msra.mxu0 0.0
        %514 = vmatprep.subr.mxu0 0.0
        %515 = vmatpush1.xpose.msra.mxu0 0.0
        %516 = vmatprep.subr.mxu0 0.0
        %517 = vmatpush1.xpose.msra.mxu0 0.0
        %518 = vmatprep.subr.mxu0 0.0
        %519 = vmatpush1.xpose.msra.mxu0 0.0
        %520 = vmatprep.subr.mxu0 0.0
        %521 = vmatpush1.xpose.msra.mxu0 0.0
        %522 = vmatprep.subr.mxu0 0.0
        %523 = vmatpush1.xpose.msra.mxu0 0.0
        %524 = vmatprep.subr.mxu0 0.0
        %525 = vmatpush1.xpose.msra.mxu0 0.0
        %526 = vmatprep.subr.mxu0 0.0
        %527 = vmatpush1.xpose.msra.mxu0 0.0
        %528 = vmatprep.subr.mxu0 0.0
        %529 = vmatpush1.xpose.msra.mxu0 0.0
        %530 = vmatprep.subr.mxu0 0.0
        %531 = vmatpush1.xpose.msra.mxu0 0.0
        %532 = vmatprep.subr.mxu0 0.0
        %533 = vmatpush1.xpose.msra.mxu0 0.0
        %534 = vmatprep.subr.mxu0 0.0
        %535 = vmatpush1.xpose.msra.mxu0 0.0
        %536 = vmatprep.subr.mxu0 0.0
        %537 = vmatpush1.xpose.msra.mxu0 0.0
        %538 = vmatprep.subr.mxu0 0.0
        %539 = vmatpush1.xpose.msra.mxu0 0.0
        %540 = vmatprep.subr.mxu0 0.0
        %541 = vmatpush1.xpose.msra.mxu0 0.0
        %542 = vmatprep.subr.mxu0 0.0
        %543 = vmatpush1.xpose.msra.mxu0 0.0
        %544 = vmatprep.subr.mxu0 0.0
        %545 = vmatpush1.xpose.msra.mxu0 0.0
        %546 = vmatprep.subr.mxu0 0.0
        %547 = vmatpush1.xpose.msra.mxu0 0.0
        %548 = vmatprep.subr.mxu0 0.0
        %549 = vmatpush1.xpose.msra.mxu0 0.0
        %550 = vmatprep.subr.mxu0 0.0
        %551 = vmatpush1.xpose.msra.mxu0 0.0
        %552 = vmatprep.subr.mxu0 0.0
        %553 = vmatpush1.xpose.msra.mxu0 0.0
        %554 = vmatprep.subr.mxu0 0.0
        %555 = vmatpush1.xpose.msra.mxu0 0.0
        %556 = vmatprep.subr.mxu0 0.0
        %557 = vmatpush1.xpose.msra.mxu0 0.0
        %558 = vmatprep.subr.mxu0 0.0
        %559 = vmatpush1.xpose.msra.mxu0 0.0
        %560 = vmatprep.subr.mxu0 0.0
        %561 = vmatpush1.xpose.msra.mxu0 0.0
        %562 = vmatprep.subr.mxu0 0.0
        %563 = vmatpush1.xpose.msra.mxu0 0.0
        %564 = vmatprep.mubr.f32.mxu0 0.0
        %565 = vmatmul.mubr.f32.gmra.mrb[0].mxu0 %v437
        %v566 = vpop.f32.mrb[0].mxu0
        %v567 = vadd.f32 0.0, %v566
        %v568 = vpop.f32.mrb[0].mxu0
        %569 = vdwg.mxu0
        %v570 = vlaneseq
        %v571 = vshrl.u32 %v570, 7
        %v572 = vsub.s32 0, %v571
        %v573 = vrot.slane %v567, %v572
        %v574 = vadd.f32 %v497, %v573
        %v575 = vadd.f32 %v499, %v573
        %vm576 = vcmp.gt.f32.partialorder %v574, 0.0
        %vm577 = vcmp.gt.f32.partialorder %v575, 0.0
        %v578 = vmul.f32 %v574, 0.2
        %v579 = vmul.f32 %v575, 0.2
        %v580 = vsel %vm576, %v574, %v578
        %v581 = vsel %vm577, %v575, %v579
        %vm582 = vcmp.gt.f32.partialorder %v434, 0.0
        %vm583 = vcmp.gt.f32.partialorder %v435, 0.0
        %v584 = vsel %vm582, %v580, -1e+09
        %v585 = vsel %vm583, %v581, -1e+09
        %vm586 = vcmask 130048
        %v587 = vsel %vm586, %v584, -inf
        %588 = vmax.xlane.f32.xlu0 %v587
        %v589 = vpop.xlane.xlu0 %588
        %v590 = vsel %vm586, %v585, -inf
        %591 = vmax.xlane.f32.xlu0 %v590
        %v592 = vpop.xlane.xlu0 %591
        %v593 = vsub.f32 %v584, %v589
        %v594 = vsub.f32 %v585, %v592
        %v595 = vmul.f32 %v593, 1.442695
        %v596 = vpow.pop %v595
        %v597 = vmul.f32 %v594, 1.442695
        %v598 = vpow.pop %v597
        %v599 = vsel %vm586, %v596, 0.0
        %600 = vadd.xlane.f32.xlu0 %v599
        %v601 = vpop.xlane.xlu0 %600
        %v602 = vsel %vm586, %v598, 0.0
        %603 = vadd.xlane.f32.xlu0 %v602
        %v604 = vpop.xlane.xlu0 %603
        %v605 = vrcp.pop %v601
        %v606 = vrcp.pop %v604
        %v607 = vmul.f32 %v596, %v605
        %v608 = vmul.f32 %v598, %v606
        %v609 = vpack.c.bf16 %v608, %v607
        %v611 = vsel %vm586, %v609, 0
        %613 = vmatprep.subr.bf16.mxu0 0
        %614 = vmatpush1.bf16.msra.mxu0 %v432
        %615 = vmatprep.subr.bf16.mxu0 0
        %616 = vmatpush1.bf16.msra.mxu0 0
        %617 = vmatprep.subr.bf16.mxu0 0
        %618 = vmatpush1.bf16.msra.mxu0 0
        %619 = vmatprep.subr.bf16.mxu0 0
        %620 = vmatpush1.bf16.msra.mxu0 0
        %621 = vmatprep.subr.bf16.mxu0 0
        %622 = vmatpush1.bf16.msra.mxu0 0
        %623 = vmatprep.subr.bf16.mxu0 0
        %624 = vmatpush1.bf16.msra.mxu0 0
        %625 = vmatprep.subr.bf16.mxu0 0
        %626 = vmatpush1.bf16.msra.mxu0 0
        %627 = vmatprep.subr.bf16.mxu0 0
        %628 = vmatpush1.bf16.msra.mxu0 0
        %629 = vmatprep.subr.bf16.mxu0 0
        %630 = vmatpush1.bf16.msra.mxu0 0
        %631 = vmatprep.subr.bf16.mxu0 0
        %632 = vmatpush1.bf16.msra.mxu0 0
        %633 = vmatprep.subr.bf16.mxu0 0
        %634 = vmatpush1.bf16.msra.mxu0 0
        %635 = vmatprep.subr.bf16.mxu0 0
        %636 = vmatpush1.bf16.msra.mxu0 0
        %637 = vmatprep.subr.bf16.mxu0 0
        %638 = vmatpush1.bf16.msra.mxu0 0
        %639 = vmatprep.subr.bf16.mxu0 0
        %640 = vmatpush1.bf16.msra.mxu0 0
        %641 = vmatprep.subr.bf16.mxu0 0
        %642 = vmatpush1.bf16.msra.mxu0 0
        %643 = vmatprep.subr.bf16.mxu0 0
        %644 = vmatpush1.bf16.msra.mxu0 0
        %645 = vmatprep.mubr.bf16.mxu0 0
        %646 = vmatmul.mubr.bf16.gmra.mrb[0].mxu0 %v611
        %v647 = vpop.f32.mrb[0].mxu0
        %v648 = vadd.f32 0.0, %v647
        %v649 = vpop.f32.mrb[0].mxu0
        %v650 = vpop.f32.mrb[0].mxu0
        %v651 = vadd.f32 0.0, %v650
        %v652 = vpop.f32.mrb[0].mxu0
        %653 = vdwg.mxu0
        %vm654 = vcmask 128000
        %v655 = vsel %vm654, %v433, 0.0
        %656 = vadd.xlane.f32.xlu0 %v655
        %v657 = vpop.xlane.xlu0 %656
        %v658 = vmax.f32 %v657, 1.0
        %v659 = vrcp.pop %v658
        %v660 = vpack.c.bf16 %v433, %v433
        %v662 = vsel %vm586, %v660, 0
        %664 = vmatprep.subr.bf16.mxu0 0
        %665 = vmatpush1.bf16.msra.mxu0 %v432
        %666 = vmatprep.subr.bf16.mxu0 0
        %667 = vmatpush1.bf16.msra.mxu0 0
        %668 = vmatprep.subr.bf16.mxu0 0
        %669 = vmatpush1.bf16.msra.mxu0 0
        %670 = vmatprep.subr.bf16.mxu0 0
        %671 = vmatpush1.bf16.msra.mxu0 0
        %672 = vmatprep.subr.bf16.mxu0 0
        %673 = vmatpush1.bf16.msra.mxu0 0
        %674 = vmatprep.subr.bf16.mxu0 0
        %675 = vmatpush1.bf16.msra.mxu0 0
        %676 = vmatprep.subr.bf16.mxu0 0
        %677 = vmatpush1.bf16.msra.mxu0 0
        %678 = vmatprep.subr.bf16.mxu0 0
        %679 = vmatpush1.bf16.msra.mxu0 0
        %680 = vmatprep.subr.bf16.mxu0 0
        %681 = vmatpush1.bf16.msra.mxu0 0
        %682 = vmatprep.subr.bf16.mxu0 0
        %683 = vmatpush1.bf16.msra.mxu0 0
        %684 = vmatprep.subr.bf16.mxu0 0
        %685 = vmatpush1.bf16.msra.mxu0 0
        %686 = vmatprep.subr.bf16.mxu0 0
        %687 = vmatpush1.bf16.msra.mxu0 0
        %688 = vmatprep.subr.bf16.mxu0 0
        %689 = vmatpush1.bf16.msra.mxu0 0
        %690 = vmatprep.subr.bf16.mxu0 0
        %691 = vmatpush1.bf16.msra.mxu0 0
        %692 = vmatprep.subr.bf16.mxu0 0
        %693 = vmatpush1.bf16.msra.mxu0 0
        %694 = vmatprep.subr.bf16.mxu0 0
        %695 = vmatpush1.bf16.msra.mxu0 0
        %696 = vmatprep.mubr.bf16.mxu0 0
        %697 = vmatmul.mubr.bf16.gmra.mrb[0].mxu0 %v662
        %v698 = vpop.f32.mrb[0].mxu0
        %v699 = vadd.f32 0.0, %v698
        %v700 = vpop.f32.mrb[0].mxu0
        %v701 = vpop.f32.mrb[0].mxu0
        %v702 = vpop.f32.mrb[0].mxu0
        %703 = vdwg.mxu0
        %v704 = vmul.f32 %v699, %v659
        %vm705 = vcmp.gt.f32.partialorder %v704, 0.0
        %v706 = vmin.f32 %v704, 0.0
        %v707 = vmul.f32 %v706, 1.442695
        %v708 = vpow.pop %v707
        %v709 = vsub.f32 %v708, 1.0
        %v710 = vsel %vm705, %v704, %v709
        %v712 = vcombine.high %v433, %v433
        %v714 = vunpack.c.l.s4 1966171168
        %v715 = vunpack.c.0.s8 %v714
        %v716 = vlaneseq
        %v717 = vshrl.u32 %v716, 7
        %v718 = vsub.s32 %v715, %v717
        %v719 = vrot.slane %v433, %v718
        %v721 = vunpack.c.l.s4 1966171168
        %v722 = vunpack.c.0.s8 %v721
        %v723 = vlaneseq
        %v724 = vshrl.u32 %v723, 7
        %v725 = vsub.s32 %v722, %v724
        %v726 = vrot.slane %v712, %v725
        %v727 = vcombine.high %v719, %v719
        %v728 = vcombine.high %v726, %v726
        %v730 = vunpack.c.l.s4 1966171168
        %v731 = vunpack.c.0.s8 %v730
        %v732 = vlaneseq
        %v733 = vshrl.u32 %v732, 7
        %v734 = vsub.s32 %v731, %v733
        %v735 = vrot.slane %v719, %v734
        %v737 = vunpack.c.l.s4 1966171168
        %v738 = vunpack.c.0.s8 %v737
        %v739 = vlaneseq
        %v740 = vshrl.u32 %v739, 7
        %v741 = vsub.s32 %v738, %v740
        %v742 = vrot.slane %v726, %v741
        %v744 = vunpack.c.l.s4 1966171168
        %v745 = vunpack.c.0.s8 %v744
        %v746 = vlaneseq
        %v747 = vshrl.u32 %v746, 7
        %v748 = vsub.s32 %v745, %v747
        %v749 = vrot.slane %v727, %v748
        %v751 = vunpack.c.l.s4 1966171168
        %v752 = vunpack.c.0.s8 %v751
        %v753 = vlaneseq
        %v754 = vshrl.u32 %v753, 7
        %v755 = vsub.s32 %v752, %v754
        %v756 = vrot.slane %v728, %v755
        %v757 = vcombine.high %v735, %v735
        %v758 = vcombine.high %v749, %v749
        %v759 = vlaneseq
        %v760 = vshrl.u32 %v759, 7
        %v761 = vsub.s32 0, %v760
        %v762 = vrot.slane %v735, %v761
        %v763 = vlaneseq
        %v764 = vshrl.u32 %v763, 7
        %v765 = vsub.s32 0, %v764
        %v766 = vrot.slane %v749, %v765
        %v767 = vlaneseq
        %v768 = vshrl.u32 %v767, 7
        %v769 = vsub.s32 0, %v768
        %v770 = vrot.slane %v757, %v769
        %v771 = vlaneseq
        %v772 = vshrl.u32 %v771, 7
        %v773 = vsub.s32 0, %v772
        %v774 = vrot.slane %v758, %v773
        %v775 = vlaneseq
        %v776 = vshrl.u32 %v775, 7
        %v777 = vsub.s32 0, %v776
        %v778 = vrot.slane %v742, %v777
        %v779 = vlaneseq
        %v780 = vshrl.u32 %v779, 7
        %v781 = vsub.s32 0, %v780
        %v782 = vrot.slane %v756, %v781
        %vm789 = vcmp.gt.f32.partialorder %v762, 0.0
        %vm790 = vcmp.gt.f32.partialorder %v766, 0.0
        %vm791 = vcmp.gt.f32.partialorder %v770, 0.0
        %vm792 = vcmp.gt.f32.partialorder %v774, 0.0
        %vm793 = vcmp.gt.f32.partialorder %v778, 0.0
        %vm794 = vcmp.gt.f32.partialorder %v782, 0.0
        %v795 = vsel %vm789, %v580, -1e+09
        %v796 = vsel %vm789, %v581, -1e+09
        %v797 = vsel %vm790, %v580, -1e+09
        %v798 = vsel %vm790, %v581, -1e+09
        %v799 = vsel %vm791, %v580, -1e+09
        %v800 = vsel %vm791, %v581, -1e+09
        %v801 = vsel %vm792, %v580, -1e+09
        %v802 = vsel %vm792, %v581, -1e+09
        %v803 = vsel %vm793, %v580, -1e+09
        %v804 = vsel %vm793, %v581, -1e+09
        %v805 = vsel %vm794, %v580, -1e+09
        %v806 = vsel %vm794, %v581, -1e+09
        %v807 = vsel %vm586, %v795, -inf
        %808 = vmax.xlane.f32.xlu0 %v807
        %v809 = vpop.xlane.xlu0 %808
        %v810 = vsel %vm586, %v796, -inf
        %811 = vmax.xlane.f32.xlu0 %v810
        %v812 = vpop.xlane.xlu0 %811
        %v813 = vsel %vm586, %v797, -inf
        %814 = vmax.xlane.f32.xlu0 %v813
        %v815 = vpop.xlane.xlu0 %814
        %v816 = vsel %vm586, %v798, -inf
        %817 = vmax.xlane.f32.xlu0 %v816
        %v818 = vpop.xlane.xlu0 %817
        %v819 = vsel %vm586, %v799, -inf
        %820 = vmax.xlane.f32.xlu0 %v819
        %v821 = vpop.xlane.xlu0 %820
        %v822 = vsel %vm586, %v800, -inf
        %823 = vmax.xlane.f32.xlu0 %v822
        %v824 = vpop.xlane.xlu0 %823
        %v825 = vsel %vm586, %v801, -inf
        %826 = vmax.xlane.f32.xlu0 %v825
        %v827 = vpop.xlane.xlu0 %826
        %v828 = vsel %vm586, %v802, -inf
        %829 = vmax.xlane.f32.xlu0 %v828
        %v830 = vpop.xlane.xlu0 %829
        %v831 = vsel %vm586, %v803, -inf
        %832 = vmax.xlane.f32.xlu0 %v831
        %v833 = vpop.xlane.xlu0 %832
        %v834 = vsel %vm586, %v804, -inf
        %835 = vmax.xlane.f32.xlu0 %v834
        %v836 = vpop.xlane.xlu0 %835
        %v837 = vsel %vm586, %v805, -inf
        %838 = vmax.xlane.f32.xlu0 %v837
        %v839 = vpop.xlane.xlu0 %838
        %v840 = vsel %vm586, %v806, -inf
        %841 = vmax.xlane.f32.xlu0 %v840
        %v842 = vpop.xlane.xlu0 %841
        %v843 = vsub.f32 %v795, %v809
        %v844 = vsub.f32 %v796, %v812
        %v845 = vsub.f32 %v797, %v815
        %v846 = vsub.f32 %v798, %v818
        %v847 = vsub.f32 %v799, %v821
        %v848 = vsub.f32 %v800, %v824
        %v849 = vsub.f32 %v801, %v827
        %v850 = vsub.f32 %v802, %v830
        %v851 = vsub.f32 %v803, %v833
        %v852 = vsub.f32 %v804, %v836
        %v853 = vsub.f32 %v805, %v839
        %v854 = vsub.f32 %v806, %v842
        %v855 = vmul.f32 %v843, 1.442695
        %v856 = vpow.pop %v855
        %v857 = vmul.f32 %v844, 1.442695
        %v858 = vpow.pop %v857
        %v859 = vmul.f32 %v845, 1.442695
        %v860 = vpow.pop %v859
        %v861 = vmul.f32 %v846, 1.442695
        %v862 = vpow.pop %v861
        %v863 = vmul.f32 %v847, 1.442695
        %v864 = vpow.pop %v863
        %v865 = vmul.f32 %v848, 1.442695
        %v866 = vpow.pop %v865
        %v867 = vmul.f32 %v849, 1.442695
        %v868 = vpow.pop %v867
        %v869 = vmul.f32 %v850, 1.442695
        %v870 = vpow.pop %v869
        %v871 = vmul.f32 %v851, 1.442695
        %v872 = vpow.pop %v871
        %v873 = vmul.f32 %v852, 1.442695
        %v874 = vpow.pop %v873
        %v875 = vmul.f32 %v853, 1.442695
        %v876 = vpow.pop %v875
        %v877 = vmul.f32 %v854, 1.442695
        %v878 = vpow.pop %v877
        %v879 = vsel %vm586, %v856, 0.0
        %880 = vadd.xlane.f32.xlu0 %v879
        %v881 = vpop.xlane.xlu0 %880
        %v882 = vsel %vm586, %v858, 0.0
        %883 = vadd.xlane.f32.xlu0 %v882
        %v884 = vpop.xlane.xlu0 %883
        %v885 = vsel %vm586, %v860, 0.0
        %886 = vadd.xlane.f32.xlu0 %v885
        %v887 = vpop.xlane.xlu0 %886
        %v888 = vsel %vm586, %v862, 0.0
        %889 = vadd.xlane.f32.xlu0 %v888
        %v890 = vpop.xlane.xlu0 %889
        %v891 = vsel %vm586, %v864, 0.0
        %892 = vadd.xlane.f32.xlu0 %v891
        %v893 = vpop.xlane.xlu0 %892
        %v894 = vsel %vm586, %v866, 0.0
        %895 = vadd.xlane.f32.xlu0 %v894
        %v896 = vpop.xlane.xlu0 %895
        %v897 = vsel %vm586, %v868, 0.0
        %898 = vadd.xlane.f32.xlu0 %v897
        %v899 = vpop.xlane.xlu0 %898
        %v900 = vsel %vm586, %v870, 0.0
        %901 = vadd.xlane.f32.xlu0 %v900
        %v902 = vpop.xlane.xlu0 %901
        %v903 = vsel %vm586, %v872, 0.0
        %904 = vadd.xlane.f32.xlu0 %v903
        %v905 = vpop.xlane.xlu0 %904
        %v906 = vsel %vm586, %v874, 0.0
        %907 = vadd.xlane.f32.xlu0 %v906
        %v908 = vpop.xlane.xlu0 %907
        %v909 = vsel %vm586, %v876, 0.0
        %910 = vadd.xlane.f32.xlu0 %v909
        %v911 = vpop.xlane.xlu0 %910
        %v912 = vsel %vm586, %v878, 0.0
        %913 = vadd.xlane.f32.xlu0 %v912
        %v914 = vpop.xlane.xlu0 %913
        %v915 = vrcp.pop %v881
        %v916 = vrcp.pop %v884
        %v917 = vrcp.pop %v887
        %v918 = vrcp.pop %v890
        %v919 = vrcp.pop %v893
        %v920 = vrcp.pop %v896
        %v921 = vrcp.pop %v899
        %v922 = vrcp.pop %v902
        %v923 = vrcp.pop %v905
        %v924 = vrcp.pop %v908
        %v925 = vrcp.pop %v911
        %v926 = vrcp.pop %v914
        %v927 = vmul.f32 %v856, %v915
        %v928 = vmul.f32 %v858, %v916
        %v929 = vmul.f32 %v860, %v917
        %v930 = vmul.f32 %v862, %v918
        %v931 = vmul.f32 %v864, %v919
        %v932 = vmul.f32 %v866, %v920
        %v933 = vmul.f32 %v868, %v921
        %v934 = vmul.f32 %v870, %v922
        %v935 = vmul.f32 %v872, %v923
        %v936 = vmul.f32 %v874, %v924
        %v937 = vmul.f32 %v876, %v925
        %v938 = vmul.f32 %v878, %v926
        %v939 = vpack.c.bf16 %v928, %v927
        %v940 = vpack.c.bf16 %v930, %v929
        %v941 = vpack.c.bf16 %v932, %v931
        %v942 = vpack.c.bf16 %v934, %v933
        %v943 = vpack.c.bf16 %v936, %v935
        %v944 = vpack.c.bf16 %v938, %v937
        %v946 = vsel %vm586, %v939, 0
        %v949 = vsel %vm586, %v940, 0
        %v952 = vsel %vm586, %v941, 0
        %v955 = vsel %vm586, %v942, 0
        %v958 = vsel %vm586, %v943, 0
        %v961 = vsel %vm586, %v944, 0
        %963 = vmatprep.subr.bf16.mxu0 0
        %964 = vmatpush1.bf16.msra.mxu0 %v432
        %965 = vmatprep.subr.bf16.mxu0 0
        %966 = vmatpush1.bf16.msra.mxu0 0
        %967 = vmatprep.subr.bf16.mxu0 0
        %968 = vmatpush1.bf16.msra.mxu0 0
        %969 = vmatprep.subr.bf16.mxu0 0
        %970 = vmatpush1.bf16.msra.mxu0 0
        %971 = vmatprep.subr.bf16.mxu0 0
        %972 = vmatpush1.bf16.msra.mxu0 0
        %973 = vmatprep.subr.bf16.mxu0 0
        %974 = vmatpush1.bf16.msra.mxu0 0
        %975 = vmatprep.subr.bf16.mxu0 0
        %976 = vmatpush1.bf16.msra.mxu0 0
        %977 = vmatprep.subr.bf16.mxu0 0
        %978 = vmatpush1.bf16.msra.mxu0 0
        %979 = vmatprep.subr.bf16.mxu0 0
        %980 = vmatpush1.bf16.msra.mxu0 0
        %981 = vmatprep.subr.bf16.mxu0 0
        %982 = vmatpush1.bf16.msra.mxu0 0
        %983 = vmatprep.subr.bf16.mxu0 0
        %984 = vmatpush1.bf16.msra.mxu0 0
        %985 = vmatprep.subr.bf16.mxu0 0
        %986 = vmatpush1.bf16.msra.mxu0 0
        %987 = vmatprep.subr.bf16.mxu0 0
        %988 = vmatpush1.bf16.msra.mxu0 0
        %989 = vmatprep.subr.bf16.mxu0 0
        %990 = vmatpush1.bf16.msra.mxu0 0
        %991 = vmatprep.subr.bf16.mxu0 0
        %992 = vmatpush1.bf16.msra.mxu0 0
        %993 = vmatprep.subr.bf16.mxu0 0
        %994 = vmatpush1.bf16.msra.mxu0 0
        %995 = vmatprep.mubr.bf16.mxu0 0
        %996 = vmatmul.mubr.bf16.gmra.mrb[0].mxu0 %v946
        %v997 = vpop.f32.mrb[0].mxu0
        %v998 = vadd.f32 0.0, %v997
        %v999 = vpop.f32.mrb[0].mxu0
        %v1000 = vpop.f32.mrb[0].mxu0
        %v1001 = vadd.f32 0.0, %v1000
        %v1002 = vpop.f32.mrb[0].mxu0
        %1003 = vmatprep.mubr.bf16.mxu0 0
        %1004 = vmatmul.mubr.bf16.gmra.mrb[0].mxu0 %v949
        %v1005 = vpop.f32.mrb[0].mxu0
        %v1006 = vadd.f32 0.0, %v1005
        %v1007 = vpop.f32.mrb[0].mxu0
        %v1008 = vpop.f32.mrb[0].mxu0
        %v1009 = vadd.f32 0.0, %v1008
        %v1010 = vpop.f32.mrb[0].mxu0
        %1011 = vmatprep.mubr.bf16.mxu0 0
        %1012 = vmatmul.mubr.bf16.gmra.mrb[0].mxu0 %v952
        %v1013 = vpop.f32.mrb[0].mxu0
        %v1014 = vadd.f32 0.0, %v1013
        %v1015 = vpop.f32.mrb[0].mxu0
        %v1016 = vpop.f32.mrb[0].mxu0
        %v1017 = vadd.f32 0.0, %v1016
        %v1018 = vpop.f32.mrb[0].mxu0
        %1019 = vmatprep.mubr.bf16.mxu0 0
        %1020 = vmatmul.mubr.bf16.gmra.mrb[0].mxu0 %v955
        %v1021 = vpop.f32.mrb[0].mxu0
        %v1022 = vadd.f32 0.0, %v1021
        %v1023 = vpop.f32.mrb[0].mxu0
        %v1024 = vpop.f32.mrb[0].mxu0
        %v1025 = vadd.f32 0.0, %v1024
        %v1026 = vpop.f32.mrb[0].mxu0
        %1027 = vmatprep.mubr.bf16.mxu0 0
        %1028 = vmatmul.mubr.bf16.gmra.mrb[0].mxu0 %v958
        %v1029 = vpop.f32.mrb[0].mxu0
        %v1030 = vadd.f32 0.0, %v1029
        %v1031 = vpop.f32.mrb[0].mxu0
        %v1032 = vpop.f32.mrb[0].mxu0
        %v1033 = vadd.f32 0.0, %v1032
        %v1034 = vpop.f32.mrb[0].mxu0
        %1035 = vmatprep.mubr.bf16.mxu0 0
        %1036 = vmatmul.mubr.bf16.gmra.mrb[0].mxu0 %v961
        %v1037 = vpop.f32.mrb[0].mxu0
        %v1038 = vadd.f32 0.0, %v1037
        %v1039 = vpop.f32.mrb[0].mxu0
        %v1040 = vpop.f32.mrb[0].mxu0
        %v1041 = vadd.f32 0.0, %v1040
        %v1042 = vpop.f32.mrb[0].mxu0
        %1043 = vdwg.mxu0
        %vm1044 = vcmp.gt.f32.partialorder %v998, 0.0
        %vm1045 = vcmp.gt.f32.partialorder %v1001, 0.0
        %vm1046 = vcmp.gt.f32.partialorder %v1006, 0.0
        %vm1047 = vcmp.gt.f32.partialorder %v1009, 0.0
        %vm1048 = vcmp.gt.f32.partialorder %v1014, 0.0
        %vm1049 = vcmp.gt.f32.partialorder %v1017, 0.0
        %vm1050 = vcmp.gt.f32.partialorder %v1022, 0.0
        %vm1051 = vcmp.gt.f32.partialorder %v1025, 0.0
        %vm1052 = vcmp.gt.f32.partialorder %v1030, 0.0
        %vm1053 = vcmp.gt.f32.partialorder %v1033, 0.0
        %vm1054 = vcmp.gt.f32.partialorder %v1038, 0.0
        %vm1055 = vcmp.gt.f32.partialorder %v1041, 0.0
        %v1056 = vmin.f32 %v998, 0.0
        %v1057 = vmin.f32 %v1001, 0.0
        %v1058 = vmin.f32 %v1006, 0.0
        %v1059 = vmin.f32 %v1009, 0.0
        %v1060 = vmin.f32 %v1014, 0.0
        %v1061 = vmin.f32 %v1017, 0.0
        %v1062 = vmin.f32 %v1022, 0.0
        %v1063 = vmin.f32 %v1025, 0.0
        %v1064 = vmin.f32 %v1030, 0.0
        %v1065 = vmin.f32 %v1033, 0.0
        %v1066 = vmin.f32 %v1038, 0.0
        %v1067 = vmin.f32 %v1041, 0.0
        %v1068 = vmul.f32 %v1056, 1.442695
        %v1069 = vpow.pop %v1068
        %v1070 = vmul.f32 %v1057, 1.442695
        %v1071 = vpow.pop %v1070
        %v1072 = vmul.f32 %v1058, 1.442695
        %v1073 = vpow.pop %v1072
        %v1074 = vmul.f32 %v1059, 1.442695
        %v1075 = vpow.pop %v1074
        %v1076 = vmul.f32 %v1060, 1.442695
        %v1077 = vpow.pop %v1076
        %v1078 = vmul.f32 %v1061, 1.442695
        %v1079 = vpow.pop %v1078
        %v1080 = vmul.f32 %v1062, 1.442695
        %v1081 = vpow.pop %v1080
        %v1082 = vmul.f32 %v1063, 1.442695
        %v1083 = vpow.pop %v1082
        %v1084 = vmul.f32 %v1064, 1.442695
        %v1085 = vpow.pop %v1084
        %v1086 = vmul.f32 %v1065, 1.442695
        %v1087 = vpow.pop %v1086
        %v1088 = vmul.f32 %v1066, 1.442695
        %v1089 = vpow.pop %v1088
        %v1090 = vmul.f32 %v1067, 1.442695
        %v1091 = vpow.pop %v1090
        %v1092 = vsub.f32 %v1069, 1.0
        %v1093 = vsub.f32 %v1071, 1.0
        %v1094 = vsub.f32 %v1073, 1.0
        %v1095 = vsub.f32 %v1075, 1.0
        %v1096 = vsub.f32 %v1077, 1.0
        %v1097 = vsub.f32 %v1079, 1.0
        %v1098 = vsub.f32 %v1081, 1.0
        %v1099 = vsub.f32 %v1083, 1.0
        %v1100 = vsub.f32 %v1085, 1.0
        %v1101 = vsub.f32 %v1087, 1.0
        %v1102 = vsub.f32 %v1089, 1.0
        %v1103 = vsub.f32 %v1091, 1.0
        %v1104 = vsel %vm1044, %v998, %v1092
        %v1105 = vsel %vm1045, %v1001, %v1093
        %v1106 = vsel %vm1046, %v1006, %v1094
        %v1107 = vsel %vm1047, %v1009, %v1095
        %v1108 = vsel %vm1048, %v1014, %v1096
        %v1109 = vsel %vm1049, %v1017, %v1097
        %v1110 = vsel %vm1050, %v1022, %v1098
        %v1111 = vsel %vm1051, %v1025, %v1099
        %v1112 = vsel %vm1052, %v1030, %v1100
        %v1113 = vsel %vm1053, %v1033, %v1101
        %v1114 = vsel %vm1054, %v1038, %v1102
        %v1115 = vsel %vm1055, %v1041, %v1103
        %v1116 = vpack.c.bf16 %v710, %v710
        %v1118 = vlaneseq
        %v1119 = vshrl.u32 %v1118, 7
        %v1120 = vsub.s32 0, %v1119
        %v1121 = vrot.slane %v486, %v1120
        %v1122 = vlaneseq
        %v1123 = vshrl.u32 %v1122, 7
        %v1124 = vsub.s32 1, %v1123
        %v1125 = vrot.slane %v486, %v1124
        %1128 = vmatprep.subr.bf16.mxu0 %v471
        %1129 = vmatpush1.bf16.msra.mxu0 %v470
        %1130 = vmatprep.subr.bf16.mxu0 %v473
        %1131 = vmatpush1.bf16.msra.mxu0 %v472
        %1132 = vmatprep.subr.bf16.mxu0 %v475
        %1133 = vmatpush1.bf16.msra.mxu0 %v474
        %1134 = vmatprep.subr.bf16.mxu0 %v477
        %1135 = vmatpush1.bf16.msra.mxu0 %v476
        %1136 = vmatprep.subr.bf16.mxu0 %v479
        %1137 = vmatpush1.bf16.msra.mxu0 %v478
        %1138 = vmatprep.subr.bf16.mxu0 %v481
        %1139 = vmatpush1.bf16.msra.mxu0 %v480
        %1140 = vmatprep.subr.bf16.mxu0 %v483
        %1141 = vmatpush1.bf16.msra.mxu0 %v482
        %1142 = vmatprep.subr.bf16.mxu0 %v485
        %1143 = vmatpush1.bf16.msra.mxu0 %v484
        %1144 = vmatprep.subr.bf16.mxu0 0
        %1145 = vmatpush1.bf16.msra.mxu0 0
        %1146 = vmatprep.subr.bf16.mxu0 0
        %1147 = vmatpush1.bf16.msra.mxu0 0
        %1148 = vmatprep.subr.bf16.mxu0 0
        %1149 = vmatpush1.bf16.msra.mxu0 0
        %1150 = vmatprep.subr.bf16.mxu0 0
        %1151 = vmatpush1.bf16.msra.mxu0 0
        %1152 = vmatprep.subr.bf16.mxu0 0
        %1153 = vmatpush1.bf16.msra.mxu0 0
        %1154 = vmatprep.subr.bf16.mxu0 0
        %1155 = vmatpush1.bf16.msra.mxu0 0
        %1156 = vmatprep.subr.bf16.mxu0 0
        %1157 = vmatpush1.bf16.msra.mxu0 0
        %1158 = vmatprep.subr.bf16.mxu0 0
        %1159 = vmatpush1.bf16.msra.mxu0 0
        %1160 = vmatprep.mubr.bf16.mxu0 0
        %1161 = vmatmul.mubr.bf16.gmra.mrb[0].mxu0 %v1116
        %v1162 = vpop.f32.mrb[0].mxu0
        %v1163 = vadd.f32 %v1121, %v1162
        %v1164 = vpop.f32.mrb[0].mxu0
        %v1165 = vadd.f32 %v1125, %v1164
        %v1166 = vpop.f32.mrb[0].mxu0
        %v1167 = vpop.f32.mrb[0].mxu0
        %1168 = vdwg.mxu0
        %v1169 = vtanh.pop %v1163
        %v1170 = vtanh.pop %v1165
        %v1172 = vlaneseq
        %v1173 = vshrl.u32 %v1172, 7
        %v1174 = vsub.s32 0, %v1173
        %v1175 = vrot.slane %v487, %v1174
        %v1176 = vlaneseq
        %v1177 = vshrl.u32 %v1176, 7
        %v1178 = vsub.s32 1, %v1177
        %v1179 = vrot.slane %v487, %v1178
        %v1182 = vmul.f32 %v1169, %v1175
        %v1183 = vmul.f32 %v1170, %v1179
        %vm1184 = vcmask 1045504
        %v1185 = vsel %vm1184, %v1182, 0.0
        %v1186 = vsel %vm1184, %v1183, 0.0
        %v1187 = vadd.f32 %v1185, %v1186
        %1188 = vadd.xlane.f32.xlu0 %v1187
        %v1189 = vpop.xlane.xlu0 %1188
        %vm1190 = vcmp.gt.f32.partialorder %v433, 0.0
        %v1191 = vsel %vm1190, %v1189, -1e+09
        %v1192 = vsel %vm654, %v1191, -inf
        %v1193 = vrot.slane %v1192, 4
        %v1194 = vmax.f32 %v1192, %v1193
        %v1195 = vrot.slane %v1194, 2
        %v1196 = vmax.f32 %v1194, %v1195
        %v1197 = vrot.slane %v1196, 1
        %v1198 = vmax.f32 %v1196, %v1197
        %v1199 = vsub.f32 %v1191, %v1198
        %v1200 = vmul.f32 %v1199, 1.442695
        %v1201 = vpow.pop %v1200
        %v1202 = vsel %vm654, %v1201, 0.0
        %v1203 = vrot.slane %v1202, 4
        %v1204 = vadd.f32 %v1202, %v1203
        %v1205 = vrot.slane %v1204, 2
        %v1206 = vadd.f32 %v1204, %v1205
        %v1207 = vrot.slane %v1206, 1
        %v1208 = vadd.f32 %v1206, %v1207
        %v1209 = vrcp.pop %v1208
        %v1210 = vmul.f32 %v1201, %v1209
        %v1211 = vlaneseq
        %v1212 = vshrl.u32 %v1211, 7
        %v1213 = vsub.s32 0, %v1212
        %v1214 = vrot.slane %v1210, %v1213
        %1216 = vbcast.lane.b32.xlu0 %v1214, 256
        %v1217 = vpop.permute.xlu0 %1216
        %s1219 = sor.u32 256, 8
        %1220 = vbcast.lane.b32.xlu0 %v1214, %s1219
        %v1221 = vpop.permute.xlu0 %1220
        %v1222 = vlaneseq
        %v1223 = vshrl.u32 %v1222, 7
        %v1224 = vsub.s32 1, %v1223
        %v1225 = vrot.slane %v1210, %v1224
        %1227 = vbcast.lane.b32.xlu0 %v1225, 256
        %v1228 = vpop.permute.xlu0 %1227
        %s1230 = sor.u32 256, 8
        %1231 = vbcast.lane.b32.xlu0 %v1225, %s1230
        %v1232 = vpop.permute.xlu0 %1231
        %v1233 = vlaneseq
        %v1234 = vshrl.u32 %v1233, 7
        %v1235 = vsub.s32 2, %v1234
        %v1236 = vrot.slane %v1210, %v1235
        %1238 = vbcast.lane.b32.xlu0 %v1236, 256
        %v1239 = vpop.permute.xlu0 %1238
        %s1241 = sor.u32 256, 8
        %1242 = vbcast.lane.b32.xlu0 %v1236, %s1241
        %v1243 = vpop.permute.xlu0 %1242
        %v1244 = vlaneseq
        %v1245 = vshrl.u32 %v1244, 7
        %v1246 = vsub.s32 3, %v1245
        %v1247 = vrot.slane %v1210, %v1246
        %1249 = vbcast.lane.b32.xlu0 %v1247, 256
        %v1250 = vpop.permute.xlu0 %1249
        %s1252 = sor.u32 256, 8
        %1253 = vbcast.lane.b32.xlu0 %v1247, %s1252
        %v1254 = vpop.permute.xlu0 %1253
        %v1255 = vlaneseq
        %v1256 = vshrl.u32 %v1255, 7
        %v1257 = vsub.s32 4, %v1256
        %v1258 = vrot.slane %v1210, %v1257
        %1260 = vbcast.lane.b32.xlu0 %v1258, 256
        %v1261 = vpop.permute.xlu0 %1260
        %s1263 = sor.u32 256, 8
        %1264 = vbcast.lane.b32.xlu0 %v1258, %s1263
        %v1265 = vpop.permute.xlu0 %1264
        %v1266 = vlaneseq
        %v1267 = vshrl.u32 %v1266, 7
        %v1268 = vsub.s32 5, %v1267
        %v1269 = vrot.slane %v1210, %v1268
        %1271 = vbcast.lane.b32.xlu0 %v1269, 256
        %v1272 = vpop.permute.xlu0 %1271
        %s1274 = sor.u32 256, 8
        %1275 = vbcast.lane.b32.xlu0 %v1269, %s1274
        %v1276 = vpop.permute.xlu0 %1275
        %v1277 = vmul.f32 %v1217, %v1104
        %v1278 = vmul.f32 %v1221, %v1105
        %v1279 = vmul.f32 %v1228, %v1106
        %v1280 = vmul.f32 %v1232, %v1107
        %v1281 = vmul.f32 %v1239, %v1108
        %v1282 = vmul.f32 %v1243, %v1109
        %v1283 = vmul.f32 %v1250, %v1110
        %v1284 = vmul.f32 %v1254, %v1111
        %v1285 = vmul.f32 %v1261, %v1112
        %v1286 = vmul.f32 %v1265, %v1113
        %v1287 = vmul.f32 %v1272, %v1114
        %v1288 = vmul.f32 %v1276, %v1115
        %v1289 = vadd.f32 %v1277, %v1279
        %v1290 = vadd.f32 %v1289, %v1281
        %v1291 = vadd.f32 %v1290, %v1283
        %v1292 = vadd.f32 %v1291, %v1285
        %v1293 = vadd.f32 %v1292, %v1287
        %v1294 = vadd.f32 %v1278, %v1280
        %v1295 = vadd.f32 %v1294, %v1282
        %v1296 = vadd.f32 %v1295, %v1284
        %v1297 = vadd.f32 %v1296, %v1286
        %v1298 = vadd.f32 %v1297, %v1288
        %v1299 = vpack.c.bf16 %v651, %v648
        %1300 = vmatprep.subr.bf16.mxu0 %v471
        %1301 = vmatpush1.bf16.msra.mxu0 %v470
        %1302 = vmatprep.subr.bf16.mxu0 %v473
        %1303 = vmatpush1.bf16.msra.mxu0 %v472
        %1304 = vmatprep.subr.bf16.mxu0 %v475
        %1305 = vmatpush1.bf16.msra.mxu0 %v474
        %1306 = vmatprep.subr.bf16.mxu0 %v477
        %1307 = vmatpush1.bf16.msra.mxu0 %v476
        %1308 = vmatprep.subr.bf16.mxu0 %v479
        %1309 = vmatpush1.bf16.msra.mxu0 %v478
        %1310 = vmatprep.subr.bf16.mxu0 %v481
        %1311 = vmatpush1.bf16.msra.mxu0 %v480
        %1312 = vmatprep.subr.bf16.mxu0 %v483
        %1313 = vmatpush1.bf16.msra.mxu0 %v482
        %1314 = vmatprep.subr.bf16.mxu0 %v485
        %1315 = vmatpush1.bf16.msra.mxu0 %v484
        %1316 = vmatprep.subr.bf16.mxu0 0
        %1317 = vmatpush1.bf16.msra.mxu0 0
        %1318 = vmatprep.subr.bf16.mxu0 0
        %1319 = vmatpush1.bf16.msra.mxu0 0
        %1320 = vmatprep.subr.bf16.mxu0 0
        %1321 = vmatpush1.bf16.msra.mxu0 0
        %1322 = vmatprep.subr.bf16.mxu0 0
        %1323 = vmatpush1.bf16.msra.mxu0 0
        %1324 = vmatprep.subr.bf16.mxu0 0
        %1325 = vmatpush1.bf16.msra.mxu0 0
        %1326 = vmatprep.subr.bf16.mxu0 0
        %1327 = vmatpush1.bf16.msra.mxu0 0
        %1328 = vmatprep.subr.bf16.mxu0 0
        %1329 = vmatpush1.bf16.msra.mxu0 0
        %1330 = vmatprep.subr.bf16.mxu0 0
        %1331 = vmatpush1.bf16.msra.mxu0 0
        %1332 = vmatprep.mubr.bf16.mxu0 0
        %1333 = vmatmul.mubr.bf16.gmra.mrb[0].mxu0 %v1299
        %v1334 = vpop.f32.mrb[0].mxu0
        %v1335 = vadd.f32 %v1121, %v1334
        %v1336 = vpop.f32.mrb[0].mxu0
        %v1337 = vadd.f32 %v1125, %v1336
        %v1338 = vpop.f32.mrb[0].mxu0
        %v1339 = vadd.f32 %v1121, %v1338
        %v1340 = vpop.f32.mrb[0].mxu0
        %v1341 = vadd.f32 %v1125, %v1340
        %1342 = vdwg.mxu0
        %v1343 = vtanh.pop %v1335
        %v1344 = vtanh.pop %v1337
        %v1345 = vtanh.pop %v1339
        %v1346 = vtanh.pop %v1341
        %v1347 = vmul.f32 %v1343, %v1175
        %v1348 = vmul.f32 %v1344, %v1179
        %v1349 = vmul.f32 %v1345, %v1175
        %v1350 = vmul.f32 %v1346, %v1179
        %v1351 = vadd.f32 %v1347, %v1348
        %1352 = vadd.xlane.f32.xlu0 %v1351
        %v1353 = vpop.xlane.xlu0 %1352
        %v1354 = vadd.f32 %v1349, %v1350
        %1355 = vadd.xlane.f32.xlu0 %v1354
        %v1356 = vpop.xlane.xlu0 %1355
        %v1357 = vpack.c.bf16 %v1298, %v1293
        %1358 = vmatprep.subr.bf16.mxu0 %v471
        %1359 = vmatpush1.bf16.msra.mxu0 %v470
        %1360 = vmatprep.subr.bf16.mxu0 %v473
        %1361 = vmatpush1.bf16.msra.mxu0 %v472
        %1362 = vmatprep.subr.bf16.mxu0 %v475
        %1363 = vmatpush1.bf16.msra.mxu0 %v474
        %1364 = vmatprep.subr.bf16.mxu0 %v477
        %1365 = vmatpush1.bf16.msra.mxu0 %v476
        %1366 = vmatprep.subr.bf16.mxu0 %v479
        %1367 = vmatpush1.bf16.msra.mxu0 %v478
        %1368 = vmatprep.subr.bf16.mxu0 %v481
        %1369 = vmatpush1.bf16.msra.mxu0 %v480
        %1370 = vmatprep.subr.bf16.mxu0 %v483
        %1371 = vmatpush1.bf16.msra.mxu0 %v482
        %1372 = vmatprep.subr.bf16.mxu0 %v485
        %1373 = vmatpush1.bf16.msra.mxu0 %v484
        %1374 = vmatprep.subr.bf16.mxu0 0
        %1375 = vmatpush1.bf16.msra.mxu0 0
        %1376 = vmatprep.subr.bf16.mxu0 0
        %1377 = vmatpush1.bf16.msra.mxu0 0
        %1378 = vmatprep.subr.bf16.mxu0 0
        %1379 = vmatpush1.bf16.msra.mxu0 0
        %1380 = vmatprep.subr.bf16.mxu0 0
        %1381 = vmatpush1.bf16.msra.mxu0 0
        %1382 = vmatprep.subr.bf16.mxu0 0
        %1383 = vmatpush1.bf16.msra.mxu0 0
        %1384 = vmatprep.subr.bf16.mxu0 0
        %1385 = vmatpush1.bf16.msra.mxu0 0
        %1386 = vmatprep.subr.bf16.mxu0 0
        %1387 = vmatpush1.bf16.msra.mxu0 0
        %1388 = vmatprep.subr.bf16.mxu0 0
        %1389 = vmatpush1.bf16.msra.mxu0 0
        %1390 = vmatprep.mubr.bf16.mxu0 0
        %1391 = vmatmul.mubr.bf16.gmra.mrb[0].mxu0 %v1357
        %v1392 = vpop.f32.mrb[0].mxu0
        %v1393 = vadd.f32 %v1121, %v1392
        %v1394 = vpop.f32.mrb[0].mxu0
        %v1395 = vadd.f32 %v1125, %v1394
        %v1396 = vpop.f32.mrb[0].mxu0
        %v1397 = vadd.f32 %v1121, %v1396
        %v1398 = vpop.f32.mrb[0].mxu0
        %v1399 = vadd.f32 %v1125, %v1398
        %1400 = vdwg.mxu0
        %v1401 = vtanh.pop %v1393
        %v1402 = vtanh.pop %v1395
        %v1403 = vtanh.pop %v1397
        %v1404 = vtanh.pop %v1399
        %v1405 = vmul.f32 %v1401, %v1175
        %v1406 = vmul.f32 %v1402, %v1179
        %v1407 = vmul.f32 %v1403, %v1175
        %v1408 = vmul.f32 %v1404, %v1179
        %v1409 = vadd.f32 %v1405, %v1406
        %1410 = vadd.xlane.f32.xlu0 %v1409
        %v1411 = vpop.xlane.xlu0 %1410
        %v1412 = vadd.f32 %v1407, %v1408
        %1413 = vadd.xlane.f32.xlu0 %v1412
        %v1414 = vpop.xlane.xlu0 %1413
        %v1415 = vmax.f32 %v1353, %v1411
        %v1416 = vmax.f32 %v1356, %v1414
        %v1417 = vsub.f32 %v1353, %v1415
        %v1418 = vsub.f32 %v1356, %v1416
        %v1419 = vmul.f32 %v1417, 1.442695
        %v1420 = vpow.pop %v1419
        %v1421 = vmul.f32 %v1418, 1.442695
        %v1422 = vpow.pop %v1421
        %v1423 = vsub.f32 %v1411, %v1415
        %v1424 = vsub.f32 %v1414, %v1416
        %v1425 = vmul.f32 %v1423, 1.442695
        %v1426 = vpow.pop %v1425
        %v1427 = vmul.f32 %v1424, 1.442695
        %v1428 = vpow.pop %v1427
        %v1429 = vadd.f32 %v1420, %v1426
        %v1430 = vadd.f32 %v1422, %v1428
        %v1431 = vrcp.pop %v1429
        %v1432 = vrcp.pop %v1430
        %v1433 = vmul.f32 %v1420, %v648
        %v1434 = vmul.f32 %v1422, %v651
        %v1435 = vmul.f32 %v1426, %v1293
        %v1436 = vmul.f32 %v1428, %v1298
        %v1437 = vadd.f32 %v1433, %v1435
        %v1438 = vadd.f32 %v1434, %v1436
        %v1439 = vmul.f32 %v1437, %v1431
        %v1440 = vmul.f32 %v1438, %v1432
        %1441 = vst [vmem:[%s340] sm:$0xff] %v1439
        %1442 = vst [vmem:[%s340 + $0x8] sm:$0xff] %v1440
        %s1443 = sand.u32 %s226, 1
        %s1444 = scalar_lea.sflag [#allocation4], %s1443
        %s1445 = sand.u32 %s226, 1
        %s1446 = smul.addr %s1445, 16
        %s1447 = scalar_lea.vmem [#allocation5], %s1446
        // Predicated region
        $region61: #{hgat_forward.1} parent=55 // pred_check
          %p1448 = pneg %p236
        $region62: #{hgat_forward.1} parent=55 // pred_check_branch
          %1450 = sbr.rel (%p1448) target = $region64
        $region63: #{hgat_forward.1} parent=55 // pred_region
          %s1452 = ssub.s32 256, 256
          %1453 = vsyncadd %s1444, %s1452
          %s1454 = smul.addr %s24, 2
          %s1455 = smul.addr %s1454, 128
          %s1456 = scalar_lea.hbm %s9, %s1455
          %s1457 = sshll.u32 %s1447, 4
          %s1458 = int_to_ptr.vmem [resolvable:$true] %s1457
          %1463 = dma.vmem_to_hbm [thread:$0]  %s1458, 256, %s1456, %s1444, 128, 128, 8
        $region64: #{hgat_forward.1} parent=55 // pred_fallthru
          _
      $region56: #{hgat_forward.1} parent=5 // pred_fallthru
        _
      %p1464 = scmp.le.s32.totalorder 2, %s19
      // Predicated region
      $region65: #{hgat_forward.1} parent=5 // pred_check
        %p1465 = pneg %p1464
      $region66: #{hgat_forward.1} parent=5 // pred_check_branch
        %1467 = sbr.rel (%p1465) target = $region68
      $region67: #{hgat_forward.1} parent=5 // pred_region
        %s1468 = ssub.s32 %s19, 2
        // Predicated region
        $region69: #{hgat_forward.1} parent=67 // pred_check
          %p1469 = pneg %p242
        $region70: #{hgat_forward.1} parent=67 // pred_check_branch
          %1471 = sbr.rel (%p1469) target = $region72
        $region71: #{hgat_forward.1} parent=67 // pred_region
          %s1472 = sand.u32 %s227, 1
          %s1473 = scalar_lea.sflag [#allocation4], %s1472
          %s1474 = sand.u32 %s227, 1
          %s1475 = smul.addr %s1474, 16
          %s1476 = scalar_lea.vmem [#allocation5], %s1475
          %1477 = dma.done %s1473, 256
        $region72: #{hgat_forward.1} parent=67 // pred_fallthru
          _
      $region68: #{hgat_forward.1} parent=5 // pred_fallthru
        _
    $region6: #{hgat_forward.1} parent=1 // loop_footer
      %s23 = sadd.s32 1, %s19
    $region7: #{hgat_forward.1} parent=1 // loop_footer_branch
      %18 = sbr.rel target = $region3
    $region8: #{hgat_forward.1} parent=1 // loop_exit
      _
    %1478 = vsyncpa [#allocation3], 1
    %s1479 = scalar_lea.sflag [#allocation3], 1
    %1480 = vsyncpa %s1479, 1
    %1481 = vsyncpa [#allocation4], 1
    %s1482 = scalar_lea.sflag [#allocation4], 1
    %1483 = vsyncpa %s1482, 1

</llo_original>
